<compile_context>
chip_gen: v5e
topology: v5e:2x2
jax: 0.10.0
libtpu: 0.0.40
codegen_flags: <defaults>
</compile_context>

<pallas_src>
import math

import jax
import jax.numpy as jnp
from jax import lax
from jax.experimental import pallas as pl
from jax.experimental.pallas import tpu as pltpu

VMEM = pl.BlockSpec(memory_space=pltpu.MemorySpace.VMEM)


# ---------------------------------------------------------------------------
# Fused kernel (embedding + n_layers LSTM + head)
# ---------------------------------------------------------------------------
def make_fused_kernel(n_layers, T, B, H, E, V_pad):
    """Build the fused kernel for static (n_layers, T, B, H, E, V_pad)."""

    def kernel(*refs):
        # inputs
        ids_ref, table_ref, h0_ref, c0_ref = refs[:4]
        layer_refs = refs[4:4 + 3 * n_layers]            # (wih, whh, b) per layer
        w1_ref, b1_ref, w2_ref, b2_ref = refs[4 + 3 * n_layers:8 + 3 * n_layers]
        # outputs / scratch
        out_ref = refs[8 + 3 * n_layers]
        x_slab = refs[9 + 3 * n_layers]                  # VMEM (T*B, max(E,H))

        n = T * B

        # ---- Embedding: one-hot matmul on the MXU (vocab padded to V_pad) ----
        onehot = (
            ids_ref[...] == lax.broadcasted_iota(jnp.int32, (n, V_pad), 1)
        ).astype(jnp.float32)
        x_slab[:, 0:E] = jnp.dot(
            onehot, table_ref[...], preferred_element_type=jnp.float32
        )

        # ---- Stacked LSTM layers (gate order reordered offline: [i,f,o,g]) ----
        # TODO(synk): nn.LSTM's inter-layer dropout=0.1 is training-mode only;
        # eval-mode (no dropout) semantics are implemented here.
        h = None
        for layer in range(n_layers):
            d_in = E if layer == 0 else H
            wih = layer_refs[3 * layer + 0][...]         # (d_in, 4H)  (load once)
            whh = layer_refs[3 * layer + 1][...]         # (H, 4H)     (load once)
            b = layer_refs[3 * layer + 2][...]           # (1, 4H) = b_ih + b_hh

            # Hoisted input projection + bias for the whole sequence at once.
            gates_in = (
                jnp.dot(x_slab[:, 0:d_in], wih,
                        preferred_element_type=jnp.float32)
                + b
            )                                            # (T*B, 4H)

            h = h0_ref[layer]                            # (B, H)
            c = c0_ref[layer]                            # (B, H)
            for t in range(T):                           # fully unrolled (T static)
                g = gates_in[t * B:(t + 1) * B, :] + jnp.dot(
                    h, whh, preferred_element_type=jnp.float32
                )                                        # (B, 4H)
                sig = jax.nn.sigmoid(g[:, 0:3 * H])      # one EUP pass: i,f,o
                i_g = sig[:, 0 * H:1 * H]
                f_g = sig[:, 1 * H:2 * H]
                o_g = sig[:, 2 * H:3 * H]
                g_g = jnp.tanh(g[:, 3 * H:4 * H])        # one EUP pass: g
                c = f_g * c + i_g * g_g
                h = o_g * jnp.tanh(c)
                if layer < n_layers - 1:                 # feed next layer (VMEM)
                    x_slab[t * B:(t + 1) * B, 0:H] = h
            # last layer: only the final h is needed (== output[:, -1, :])

        # ---- Head: sigmoid(relu(h @ W1^T + b1) @ W2^T + b2) ----
        z1 = jnp.maximum(
            jnp.dot(h, w1_ref[...], preferred_element_type=jnp.float32)
            + b1_ref[...],
            0.0,
        )
        z2 = (
            jnp.dot(z1, w2_ref[...], preferred_element_type=jnp.float32)
            + b2_ref[...]
        )
        out_ref[...] = jax.nn.sigmoid(z2)

    return kernel


# ---------------------------------------------------------------------------
# Parameter init (deterministic, PyTorch-style shapes)
# ---------------------------------------------------------------------------
def init_params(key, vocab_len, embed_len, hidden_dim, n_layers):
    params = {"w_ih": [], "w_hh": [], "b_ih": [], "b_hh": []}
    key, k_emb = jax.random.split(key)
    params["embedding"] = jax.random.normal(
        k_emb, (vocab_len, embed_len), jnp.float32
    )
    k_lstm = 1.0 / math.sqrt(hidden_dim)
    for layer in range(n_layers):
        d_in = embed_len if layer == 0 else hidden_dim
        key, k1, k2, k3, k4 = jax.random.split(key, 5)
        params["w_ih"].append(
            jax.random.uniform(k1, (4 * hidden_dim, d_in), jnp.float32, -k_lstm, k_lstm)
        )
        params["w_hh"].append(
            jax.random.uniform(k2, (4 * hidden_dim, hidden_dim), jnp.float32, -k_lstm, k_lstm)
        )
        params["b_ih"].append(
            jax.random.uniform(k3, (4 * hidden_dim,), jnp.float32, -k_lstm, k_lstm)
        )
        params["b_hh"].append(
            jax.random.uniform(k4, (4 * hidden_dim,), jnp.float32, -k_lstm, k_lstm)
        )
    key, k5, k6, k7, k8 = jax.random.split(key, 5)
    k1_lin = 1.0 / math.sqrt(hidden_dim)
    params["w1"] = jax.random.uniform(k5, (24, hidden_dim), jnp.float32, -k1_lin, k1_lin)
    params["b1"] = jax.random.uniform(k6, (24,), jnp.float32, -k1_lin, k1_lin)
    k2_lin = 1.0 / math.sqrt(24)
    params["w2"] = jax.random.uniform(k7, (1, 24), jnp.float32, -k2_lin, k2_lin)
    params["b2"] = jax.random.uniform(k8, (1,), jnp.float32, -k2_lin, k2_lin)
    return params


def prepare_kernel_params(params, hidden_dim, n_layers):
    """One-time conversion to kernel-ready layout.

    * vocab padded to a multiple of 128 (lane-aligned one-hot / MXU K)
    * W_ih / W_hh pre-transposed
    * gate columns permuted from PyTorch [i,f,g,o] -> [i,f,o,g]
    * b_ih + b_hh folded into one (1, 4H) bias
    * head weights pre-transposed / biases reshaped to 2-D
    """
    H = hidden_dim
    V, E = params["embedding"].shape
    V_pad = int(pl.cdiv(V, 128) * 128)
    table = jnp.zeros((V_pad, E), jnp.float32).at[:V].set(params["embedding"])

    perm = jnp.concatenate(
        [jnp.arange(0, 2 * H), jnp.arange(3 * H, 4 * H), jnp.arange(2 * H, 3 * H)]
    )
    kp = {"table": table, "wih": [], "whh": [], "b": [], "V_pad": V_pad, "E": E}
    for l in range(n_layers):
        kp["wih"].append(params["w_ih"][l].T[:, perm])               # (d_in, 4H)
        kp["whh"].append(params["w_hh"][l].T[:, perm])               # (H, 4H)
        kp["b"].append(
            (params["b_ih"][l] + params["b_hh"][l])[perm].reshape(1, 4 * H)
        )
    kp["w1"] = params["w1"].T                                        # (H, 24)
    kp["b1"] = params["b1"].reshape(1, -1)                           # (1, 24)
    kp["w2"] = params["w2"].T                                        # (24, 1)
    kp["b2"] = params["b2"].reshape(1, 1)                            # (1, 1)
    return kp


# ---------------------------------------------------------------------------
# Forward pass (mirrors LSTMRating.forward)
# ---------------------------------------------------------------------------
def lstm_rating_forward(X_batch, kparams, state_key, hidden_dim, n_layers):
    B, T = X_batch.shape
    H = hidden_dim
    E = kparams["E"]
    V_pad = kparams["V_pad"]

    # ids in TIME-MAJOR order so slab row block [t*B:(t+1)*B] is timestep t.
    ids_tm = X_batch.astype(jnp.int32).T.reshape(T * B, 1)

    # torch.randn initial (hidden, carry), deterministic here via PRNGKey.
    hk, ck = jax.random.split(state_key)
    h0 = jax.random.normal(hk, (n_layers, B, H), jnp.float32)
    c0 = jax.random.normal(ck, (n_layers, B, H), jnp.float32)

    layer_args = []
    for l in range(n_layers):
        layer_args += [kparams["wih"][l], kparams["whh"][l], kparams["b"][l]]

    kernel = make_fused_kernel(n_layers, T, B, H, E, V_pad)
    n_in = 4 + 3 * n_layers + 4

    out = pl.pallas_call(
        kernel,
        out_shape=jax.ShapeDtypeStruct((B, 1), jnp.float32),
        in_specs=[VMEM] * n_in,
        out_specs=VMEM,
        scratch_shapes=[pltpu.VMEM((T * B, max(E, H)), jnp.float32)],
    )(
        ids_tm,
        kparams["table"],
        h0,
        c0,
        *layer_args,
        kparams["w1"],
        kparams["b1"],
        kparams["w2"],
        kparams["b2"],
    )
    return out


# ---------------------------------------------------------------------------
if __name__ == "__main__":
    VOCAB_LEN = 50
    EMBED_LEN = 32
    HIDDEN_DIM = 32
    N_LAYERS = 2
    BATCH = 2
    SEQ = 8

    root = jax.random.PRNGKey(0)
    k_params, k_data, k_state = jax.random.split(root, 3)

    params = init_params(k_params, VOCAB_LEN, EMBED_LEN, HIDDEN_DIM, N_LAYERS)
    kparams = prepare_kernel_params(params, HIDDEN_DIM, N_LAYERS)
    X_batch = jax.random.randint(k_data, (BATCH, SEQ), 0, VOCAB_LEN, dtype=jnp.int32)

    out = lstm_rating_forward(X_batch, kparams, k_state, HIDDEN_DIM, N_LAYERS)
    out = jax.block_until_ready(out)

    assert out.shape == (BATCH, 1)
    assert bool(jnp.all((out >= 0.0) & (out <= 1.0)))
    print("KERNEL_OK")
</pallas_src>

<mosaic_0001>
module attributes {stable_mosaic.version = 11 : i64} {
  func.func @kernel(%arg0: memref<16x1xi32, #tpu.memory_space<vmem>>, %arg1: memref<128x32xf32, #tpu.memory_space<vmem>>, %arg2: memref<2x2x32xf32, #tpu.memory_space<vmem>>, %arg3: memref<2x2x32xf32, #tpu.memory_space<vmem>>, %arg4: memref<32x128xf32, #tpu.memory_space<vmem>>, %arg5: memref<32x128xf32, #tpu.memory_space<vmem>>, %arg6: memref<1x128xf32, #tpu.memory_space<vmem>>, %arg7: memref<32x128xf32, #tpu.memory_space<vmem>>, %arg8: memref<32x128xf32, #tpu.memory_space<vmem>>, %arg9: memref<1x128xf32, #tpu.memory_space<vmem>>, %arg10: memref<32x24xf32, #tpu.memory_space<vmem>>, %arg11: memref<1x24xf32, #tpu.memory_space<vmem>>, %arg12: memref<24x1xf32, #tpu.memory_space<vmem>>, %arg13: memref<1x1xf32, #tpu.memory_space<vmem>>, %arg14: memref<2x1xf32, #tpu.memory_space<vmem>>, %arg15: memref<16x32xf32, #tpu.memory_space<vmem>>) attributes {dimension_semantics = [], scalar_prefetch = 0 : i64, scratch_operands = 1 : i64, tpu.core_type = #tpu.core_type<tc>} {
    %c0 = arith.constant 0 : index
    %c0_0 = arith.constant 0 : index
    %0 = vector.load %arg0[%c0, %c0_0] : memref<16x1xi32, #tpu.memory_space<vmem>>, vector<16x1xi32>
    %1 = tpu.iota {dimensions = array<i32: 1>} : vector<16x128xi32>
    %2 = vector.broadcast %0 : vector<16x1xi32> to vector<16x128xi32>
    %3 = arith.cmpi eq, %2, %1 : vector<16x128xi32>
    %4 = arith.extui %3 : vector<16x128xi1> to vector<16x128xi32>
    %5 = arith.sitofp %4 : vector<16x128xi32> to vector<16x128xf32>
    %c0_1 = arith.constant 0 : index
    %c0_2 = arith.constant 0 : index
    %6 = vector.load %arg1[%c0_1, %c0_2] : memref<128x32xf32, #tpu.memory_space<vmem>>, vector<128x32xf32>
    %cst = arith.constant dense<0.000000e+00> : vector<16x32xf32>
    %7 = tpu.matmul %5, %6, %cst {dimension_numbers = #tpu.dot_dimension_numbers<[1], [0], [0], [1], [0, 0, 1, 1], [], []>} : vector<16x128xf32>, vector<128x32xf32>, vector<16x32xf32> -> vector<16x32xf32>
    %c0_3 = arith.constant 0 : index
    %c0_4 = arith.constant 0 : index
    %8 = vector.load %arg15[%c0_3, %c0_4] : memref<16x32xf32, #tpu.memory_space<vmem>>, vector<16x32xf32>
    tpu.vector_store %arg15[%c0_3, %c0_4], %7 {strides = array<i32>} : memref<16x32xf32, #tpu.memory_space<vmem>>, vector<16x32xf32>,
    %c0_5 = arith.constant 0 : index
    %c0_6 = arith.constant 0 : index
    %9 = vector.load %arg4[%c0_5, %c0_6] : memref<32x128xf32, #tpu.memory_space<vmem>>, vector<32x128xf32>
    %c0_7 = arith.constant 0 : index
    %c0_8 = arith.constant 0 : index
    %10 = vector.load %arg5[%c0_7, %c0_8] : memref<32x128xf32, #tpu.memory_space<vmem>>, vector<32x128xf32>
    %c0_9 = arith.constant 0 : index
    %c0_10 = arith.constant 0 : index
    %11 = vector.load %arg6[%c0_9, %c0_10] : memref<1x128xf32, #tpu.memory_space<vmem>>, vector<1x128xf32>
    %c0_11 = arith.constant 0 : index
    %c0_12 = arith.constant 0 : index
    %12 = vector.load %arg15[%c0_11, %c0_12] : memref<16x32xf32, #tpu.memory_space<vmem>>, vector<16x32xf32>
    %cst_13 = arith.constant dense<0.000000e+00> : vector<16x128xf32>
    %13 = tpu.matmul %12, %9, %cst_13 {dimension_numbers = #tpu.dot_dimension_numbers<[1], [0], [0], [1], [0, 0, 1, 1], [], []>} : vector<16x32xf32>, vector<32x128xf32>, vector<16x128xf32> -> vector<16x128xf32>
    %14 = vector.broadcast %11 : vector<1x128xf32> to vector<16x128xf32>
    %15 = arith.addf %13, %14 : vector<16x128xf32>
    %c0_14 = arith.constant 0 : index
    %c0_15 = arith.constant 0 : index
    %c0_16 = arith.constant 0 : index
    %16 = vector.load %arg2[%c0_14, %c0_15, %c0_16] : memref<2x2x32xf32, #tpu.memory_space<vmem>>, vector<1x2x32xf32>
    %17 = vector.shape_cast %16 : vector<1x2x32xf32> to vector<2x32xf32>
    %c0_17 = arith.constant 0 : index
    %c0_18 = arith.constant 0 : index
    %c0_19 = arith.constant 0 : index
    %18 = vector.load %arg3[%c0_17, %c0_18, %c0_19] : memref<2x2x32xf32, #tpu.memory_space<vmem>>, vector<1x2x32xf32>
    %19 = vector.shape_cast %18 : vector<1x2x32xf32> to vector<2x32xf32>
    %20 = vector.extract_strided_slice %15 {offsets = [0, 0], sizes = [2, 128], strides = [1, 1]} : vector<16x128xf32> to vector<2x128xf32>
    %cst_20 = arith.constant dense<0.000000e+00> : vector<2x128xf32>
    %21 = tpu.matmul %17, %10, %cst_20 {dimension_numbers = #tpu.dot_dimension_numbers<[1], [0], [0], [1], [0, 0, 1, 1], [], []>} : vector<2x32xf32>, vector<32x128xf32>, vector<2x128xf32> -> vector<2x128xf32>
    %22 = arith.addf %20, %21 : vector<2x128xf32>
    %23 = vector.extract_strided_slice %22 {offsets = [0, 0], sizes = [2, 96], strides = [1, 1]} : vector<2x128xf32> to vector<2x96xf32>
    %24 = arith.negf %23 : vector<2x96xf32>
    %25 = math.exp %24 : vector<2x96xf32>
    %cst_21 = arith.constant 1.000000e+00 : f32
    %26 = vector.broadcast %cst_21 : f32 to vector<2x96xf32>
    %27 = arith.addf %26, %25 : vector<2x96xf32>
    %28 = arith.divf %26, %27 : vector<2x96xf32>
    %29 = vector.extract_strided_slice %28 {offsets = [0, 0], sizes = [2, 32], strides = [1, 1]} : vector<2x96xf32> to vector<2x32xf32>
    %30 = vector.extract_strided_slice %28 {offsets = [0, 32], sizes = [2, 32], strides = [1, 1]} : vector<2x96xf32> to vector<2x32xf32>
    %31 = vector.extract_strided_slice %28 {offsets = [0, 64], sizes = [2, 32], strides = [1, 1]} : vector<2x96xf32> to vector<2x32xf32>
    %32 = vector.extract_strided_slice %22 {offsets = [0, 96], sizes = [2, 32], strides = [1, 1]} : vector<2x128xf32> to vector<2x32xf32>
    %33 = math.tanh %32 : vector<2x32xf32>
    %34 = arith.mulf %30, %19 : vector<2x32xf32>
    %35 = arith.mulf %29, %33 : vector<2x32xf32>
    %36 = arith.addf %34, %35 : vector<2x32xf32>
    %37 = math.tanh %36 : vector<2x32xf32>
    %38 = arith.mulf %31, %37 : vector<2x32xf32>
    %c0_22 = arith.constant 0 : index
    %c0_23 = arith.constant 0 : index
    %39 = vector.load %arg15[%c0_22, %c0_23] : memref<16x32xf32, #tpu.memory_space<vmem>>, vector<2x32xf32>
    tpu.vector_store %arg15[%c0_22, %c0_23], %38 {strides = array<i32>} : memref<16x32xf32, #tpu.memory_space<vmem>>, vector<2x32xf32>,
    %40 = vector.extract_strided_slice %15 {offsets = [2, 0], sizes = [2, 128], strides = [1, 1]} : vector<16x128xf32> to vector<2x128xf32>
    %cst_24 = arith.constant dense<0.000000e+00> : vector<2x128xf32>
    %41 = tpu.matmul %38, %10, %cst_24 {dimension_numbers = #tpu.dot_dimension_numbers<[1], [0], [0], [1], [0, 0, 1, 1], [], []>} : vector<2x32xf32>, vector<32x128xf32>, vector<2x128xf32> -> vector<2x128xf32>
    %42 = arith.addf %40, %41 : vector<2x128xf32>
    %43 = vector.extract_strided_slice %42 {offsets = [0, 0], sizes = [2, 96], strides = [1, 1]} : vector<2x128xf32> to vector<2x96xf32>
    %44 = arith.negf %43 : vector<2x96xf32>
    %45 = math.exp %44 : vector<2x96xf32>
    %cst_25 = arith.constant 1.000000e+00 : f32
    %46 = vector.broadcast %cst_25 : f32 to vector<2x96xf32>
    %47 = arith.addf %46, %45 : vector<2x96xf32>
    %48 = arith.divf %46, %47 : vector<2x96xf32>
    %49 = vector.extract_strided_slice %48 {offsets = [0, 0], sizes = [2, 32], strides = [1, 1]} : vector<2x96xf32> to vector<2x32xf32>
    %50 = vector.extract_strided_slice %48 {offsets = [0, 32], sizes = [2, 32], strides = [1, 1]} : vector<2x96xf32> to vector<2x32xf32>
    %51 = vector.extract_strided_slice %48 {offsets = [0, 64], sizes = [2, 32], strides = [1, 1]} : vector<2x96xf32> to vector<2x32xf32>
    %52 = vector.extract_strided_slice %42 {offsets = [0, 96], sizes = [2, 32], strides = [1, 1]} : vector<2x128xf32> to vector<2x32xf32>
    %53 = math.tanh %52 : vector<2x32xf32>
    %54 = arith.mulf %50, %36 : vector<2x32xf32>
    %55 = arith.mulf %49, %53 : vector<2x32xf32>
    %56 = arith.addf %54, %55 : vector<2x32xf32>
    %57 = math.tanh %56 : vector<2x32xf32>
    %58 = arith.mulf %51, %57 : vector<2x32xf32>
    %c2 = arith.constant 2 : index
    %c0_26 = arith.constant 0 : index
    %59 = vector.load %arg15[%c2, %c0_26] : memref<16x32xf32, #tpu.memory_space<vmem>>, vector<2x32xf32>
    tpu.vector_store %arg15[%c2, %c0_26], %58 {strides = array<i32>} : memref<16x32xf32, #tpu.memory_space<vmem>>, vector<2x32xf32>,
    %60 = vector.extract_strided_slice %15 {offsets = [4, 0], sizes = [2, 128], strides = [1, 1]} : vector<16x128xf32> to vector<2x128xf32>
    %cst_27 = arith.constant dense<0.000000e+00> : vector<2x128xf32>
    %61 = tpu.matmul %58, %10, %cst_27 {dimension_numbers = #tpu.dot_dimension_numbers<[1], [0], [0], [1], [0, 0, 1, 1], [], []>} : vector<2x32xf32>, vector<32x128xf32>, vector<2x128xf32> -> vector<2x128xf32>
    %62 = arith.addf %60, %61 : vector<2x128xf32>
    %63 = vector.extract_strided_slice %62 {offsets = [0, 0], sizes = [2, 96], strides = [1, 1]} : vector<2x128xf32> to vector<2x96xf32>
    %64 = arith.negf %63 : vector<2x96xf32>
    %65 = math.exp %64 : vector<2x96xf32>
    %cst_28 = arith.constant 1.000000e+00 : f32
    %66 = vector.broadcast %cst_28 : f32 to vector<2x96xf32>
    %67 = arith.addf %66, %65 : vector<2x96xf32>
    %68 = arith.divf %66, %67 : vector<2x96xf32>
    %69 = vector.extract_strided_slice %68 {offsets = [0, 0], sizes = [2, 32], strides = [1, 1]} : vector<2x96xf32> to vector<2x32xf32>
    %70 = vector.extract_strided_slice %68 {offsets = [0, 32], sizes = [2, 32], strides = [1, 1]} : vector<2x96xf32> to vector<2x32xf32>
    %71 = vector.extract_strided_slice %68 {offsets = [0, 64], sizes = [2, 32], strides = [1, 1]} : vector<2x96xf32> to vector<2x32xf32>
    %72 = vector.extract_strided_slice %62 {offsets = [0, 96], sizes = [2, 32], strides = [1, 1]} : vector<2x128xf32> to vector<2x32xf32>
    %73 = math.tanh %72 : vector<2x32xf32>
    %74 = arith.mulf %70, %56 : vector<2x32xf32>
    %75 = arith.mulf %69, %73 : vector<2x32xf32>
    %76 = arith.addf %74, %75 : vector<2x32xf32>
    %77 = math.tanh %76 : vector<2x32xf32>
    %78 = arith.mulf %71, %77 : vector<2x32xf32>
    %c4 = arith.constant 4 : index
    %c0_29 = arith.constant 0 : index
    %79 = vector.load %arg15[%c4, %c0_29] : memref<16x32xf32, #tpu.memory_space<vmem>>, vector<2x32xf32>
    tpu.vector_store %arg15[%c4, %c0_29], %78 {strides = array<i32>} : memref<16x32xf32, #tpu.memory_space<vmem>>, vector<2x32xf32>,
    %80 = vector.extract_strided_slice %15 {offsets = [6, 0], sizes = [2, 128], strides = [1, 1]} : vector<16x128xf32> to vector<2x128xf32>
    %cst_30 = arith.constant dense<0.000000e+00> : vector<2x128xf32>
    %81 = tpu.matmul %78, %10, %cst_30 {dimension_numbers = #tpu.dot_dimension_numbers<[1], [0], [0], [1], [0, 0, 1, 1], [], []>} : vector<2x32xf32>, vector<32x128xf32>, vector<2x128xf32> -> vector<2x128xf32>
    %82 = arith.addf %80, %81 : vector<2x128xf32>
    %83 = vector.extract_strided_slice %82 {offsets = [0, 0], sizes = [2, 96], strides = [1, 1]} : vector<2x128xf32> to vector<2x96xf32>
    %84 = arith.negf %83 : vector<2x96xf32>
    %85 = math.exp %84 : vector<2x96xf32>
    %cst_31 = arith.constant 1.000000e+00 : f32
    %86 = vector.broadcast %cst_31 : f32 to vector<2x96xf32>
    %87 = arith.addf %86, %85 : vector<2x96xf32>
    %88 = arith.divf %86, %87 : vector<2x96xf32>
    %89 = vector.extract_strided_slice %88 {offsets = [0, 0], sizes = [2, 32], strides = [1, 1]} : vector<2x96xf32> to vector<2x32xf32>
    %90 = vector.extract_strided_slice %88 {offsets = [0, 32], sizes = [2, 32], strides = [1, 1]} : vector<2x96xf32> to vector<2x32xf32>
    %91 = vector.extract_strided_slice %88 {offsets = [0, 64], sizes = [2, 32], strides = [1, 1]} : vector<2x96xf32> to vector<2x32xf32>
    %92 = vector.extract_strided_slice %82 {offsets = [0, 96], sizes = [2, 32], strides = [1, 1]} : vector<2x128xf32> to vector<2x32xf32>
    %93 = math.tanh %92 : vector<2x32xf32>
    %94 = arith.mulf %90, %76 : vector<2x32xf32>
    %95 = arith.mulf %89, %93 : vector<2x32xf32>
    %96 = arith.addf %94, %95 : vector<2x32xf32>
    %97 = math.tanh %96 : vector<2x32xf32>
    %98 = arith.mulf %91, %97 : vector<2x32xf32>
    %c6 = arith.constant 6 : index
    %c0_32 = arith.constant 0 : index
    %99 = vector.load %arg15[%c6, %c0_32] : memref<16x32xf32, #tpu.memory_space<vmem>>, vector<2x32xf32>
    tpu.vector_store %arg15[%c6, %c0_32], %98 {strides = array<i32>} : memref<16x32xf32, #tpu.memory_space<vmem>>, vector<2x32xf32>,
    %100 = vector.extract_strided_slice %15 {offsets = [8, 0], sizes = [2, 128], strides = [1, 1]} : vector<16x128xf32> to vector<2x128xf32>
    %cst_33 = arith.constant dense<0.000000e+00> : vector<2x128xf32>
    %101 = tpu.matmul %98, %10, %cst_33 {dimension_numbers = #tpu.dot_dimension_numbers<[1], [0], [0], [1], [0, 0, 1, 1], [], []>} : vector<2x32xf32>, vector<32x128xf32>, vector<2x128xf32> -> vector<2x128xf32>
    %102 = arith.addf %100, %101 : vector<2x128xf32>
    %103 = vector.extract_strided_slice %102 {offsets = [0, 0], sizes = [2, 96], strides = [1, 1]} : vector<2x128xf32> to vector<2x96xf32>
    %104 = arith.negf %103 : vector<2x96xf32>
    %105 = math.exp %104 : vector<2x96xf32>
    %cst_34 = arith.constant 1.000000e+00 : f32
    %106 = vector.broadcast %cst_34 : f32 to vector<2x96xf32>
    %107 = arith.addf %106, %105 : vector<2x96xf32>
    %108 = arith.divf %106, %107 : vector<2x96xf32>
    %109 = vector.extract_strided_slice %108 {offsets = [0, 0], sizes = [2, 32], strides = [1, 1]} : vector<2x96xf32> to vector<2x32xf32>
    %110 = vector.extract_strided_slice %108 {offsets = [0, 32], sizes = [2, 32], strides = [1, 1]} : vector<2x96xf32> to vector<2x32xf32>
    %111 = vector.extract_strided_slice %108 {offsets = [0, 64], sizes = [2, 32], strides = [1, 1]} : vector<2x96xf32> to vector<2x32xf32>
    %112 = vector.extract_strided_slice %102 {offsets = [0, 96], sizes = [2, 32], strides = [1, 1]} : vector<2x128xf32> to vector<2x32xf32>
    %113 = math.tanh %112 : vector<2x32xf32>
    %114 = arith.mulf %110, %96 : vector<2x32xf32>
    %115 = arith.mulf %109, %113 : vector<2x32xf32>
    %116 = arith.addf %114, %115 : vector<2x32xf32>
    %117 = math.tanh %116 : vector<2x32xf32>
    %118 = arith.mulf %111, %117 : vector<2x32xf32>
    %c8 = arith.constant 8 : index
    %c0_35 = arith.constant 0 : index
    %119 = vector.load %arg15[%c8, %c0_35] : memref<16x32xf32, #tpu.memory_space<vmem>>, vector<2x32xf32>
    tpu.vector_store %arg15[%c8, %c0_35], %118 {strides = array<i32>} : memref<16x32xf32, #tpu.memory_space<vmem>>, vector<2x32xf32>,
    %120 = vector.extract_strided_slice %15 {offsets = [10, 0], sizes = [2, 128], strides = [1, 1]} : vector<16x128xf32> to vector<2x128xf32>
    %cst_36 = arith.constant dense<0.000000e+00> : vector<2x128xf32>
    %121 = tpu.matmul %118, %10, %cst_36 {dimension_numbers = #tpu.dot_dimension_numbers<[1], [0], [0], [1], [0, 0, 1, 1], [], []>} : vector<2x32xf32>, vector<32x128xf32>, vector<2x128xf32> -> vector<2x128xf32>
    %122 = arith.addf %120, %121 : vector<2x128xf32>
    %123 = vector.extract_strided_slice %122 {offsets = [0, 0], sizes = [2, 96], strides = [1, 1]} : vector<2x128xf32> to vector<2x96xf32>
    %124 = arith.negf %123 : vector<2x96xf32>
    %125 = math.exp %124 : vector<2x96xf32>
    %cst_37 = arith.constant 1.000000e+00 : f32
    %126 = vector.broadcast %cst_37 : f32 to vector<2x96xf32>
    %127 = arith.addf %126, %125 : vector<2x96xf32>
    %128 = arith.divf %126, %127 : vector<2x96xf32>
    %129 = vector.extract_strided_slice %128 {offsets = [0, 0], sizes = [2, 32], strides = [1, 1]} : vector<2x96xf32> to vector<2x32xf32>
    %130 = vector.extract_strided_slice %128 {offsets = [0, 32], sizes = [2, 32], strides = [1, 1]} : vector<2x96xf32> to vector<2x32xf32>
    %131 = vector.extract_strided_slice %128 {offsets = [0, 64], sizes = [2, 32], strides = [1, 1]} : vector<2x96xf32> to vector<2x32xf32>
    %132 = vector.extract_strided_slice %122 {offsets = [0, 96], sizes = [2, 32], strides = [1, 1]} : vector<2x128xf32> to vector<2x32xf32>
    %133 = math.tanh %132 : vector<2x32xf32>
    %134 = arith.mulf %130, %116 : vector<2x32xf32>
    %135 = arith.mulf %129, %133 : vector<2x32xf32>
    %136 = arith.addf %134, %135 : vector<2x32xf32>
    %137 = math.tanh %136 : vector<2x32xf32>
    %138 = arith.mulf %131, %137 : vector<2x32xf32>
    %c10 = arith.constant 10 : index
    %c0_38 = arith.constant 0 : index
    %139 = vector.load %arg15[%c10, %c0_38] : memref<16x32xf32, #tpu.memory_space<vmem>>, vector<2x32xf32>
    tpu.vector_store %arg15[%c10, %c0_38], %138 {strides = array<i32>} : memref<16x32xf32, #tpu.memory_space<vmem>>, vector<2x32xf32>,
    %140 = vector.extract_strided_slice %15 {offsets = [12, 0], sizes = [2, 128], strides = [1, 1]} : vector<16x128xf32> to vector<2x128xf32>
    %cst_39 = arith.constant dense<0.000000e+00> : vector<2x128xf32>
    %141 = tpu.matmul %138, %10, %cst_39 {dimension_numbers = #tpu.dot_dimension_numbers<[1], [0], [0], [1], [0, 0, 1, 1], [], []>} : vector<2x32xf32>, vector<32x128xf32>, vector<2x128xf32> -> vector<2x128xf32>
    %142 = arith.addf %140, %141 : vector<2x128xf32>
    %143 = vector.extract_strided_slice %142 {offsets = [0, 0], sizes = [2, 96], strides = [1, 1]} : vector<2x128xf32> to vector<2x96xf32>
    %144 = arith.negf %143 : vector<2x96xf32>
    %145 = math.exp %144 : vector<2x96xf32>
    %cst_40 = arith.constant 1.000000e+00 : f32
    %146 = vector.broadcast %cst_40 : f32 to vector<2x96xf32>
    %147 = arith.addf %146, %145 : vector<2x96xf32>
    %148 = arith.divf %146, %147 : vector<2x96xf32>
    %149 = vector.extract_strided_slice %148 {offsets = [0, 0], sizes = [2, 32], strides = [1, 1]} : vector<2x96xf32> to vector<2x32xf32>
    %150 = vector.extract_strided_slice %148 {offsets = [0, 32], sizes = [2, 32], strides = [1, 1]} : vector<2x96xf32> to vector<2x32xf32>
    %151 = vector.extract_strided_slice %148 {offsets = [0, 64], sizes = [2, 32], strides = [1, 1]} : vector<2x96xf32> to vector<2x32xf32>
    %152 = vector.extract_strided_slice %142 {offsets = [0, 96], sizes = [2, 32], strides = [1, 1]} : vector<2x128xf32> to vector<2x32xf32>
    %153 = math.tanh %152 : vector<2x32xf32>
    %154 = arith.mulf %150, %136 : vector<2x32xf32>
    %155 = arith.mulf %149, %153 : vector<2x32xf32>
    %156 = arith.addf %154, %155 : vector<2x32xf32>
    %157 = math.tanh %156 : vector<2x32xf32>
    %158 = arith.mulf %151, %157 : vector<2x32xf32>
    %c12 = arith.constant 12 : index
    %c0_41 = arith.constant 0 : index
    %159 = vector.load %arg15[%c12, %c0_41] : memref<16x32xf32, #tpu.memory_space<vmem>>, vector<2x32xf32>
    tpu.vector_store %arg15[%c12, %c0_41], %158 {strides = array<i32>} : memref<16x32xf32, #tpu.memory_space<vmem>>, vector<2x32xf32>,
    %160 = vector.extract_strided_slice %15 {offsets = [14, 0], sizes = [2, 128], strides = [1, 1]} : vector<16x128xf32> to vector<2x128xf32>
    %cst_42 = arith.constant dense<0.000000e+00> : vector<2x128xf32>
    %161 = tpu.matmul %158, %10, %cst_42 {dimension_numbers = #tpu.dot_dimension_numbers<[1], [0], [0], [1], [0, 0, 1, 1], [], []>} : vector<2x32xf32>, vector<32x128xf32>, vector<2x128xf32> -> vector<2x128xf32>
    %162 = arith.addf %160, %161 : vector<2x128xf32>
    %163 = vector.extract_strided_slice %162 {offsets = [0, 0], sizes = [2, 96], strides = [1, 1]} : vector<2x128xf32> to vector<2x96xf32>
    %164 = arith.negf %163 : vector<2x96xf32>
    %165 = math.exp %164 : vector<2x96xf32>
    %cst_43 = arith.constant 1.000000e+00 : f32
    %166 = vector.broadcast %cst_43 : f32 to vector<2x96xf32>
    %167 = arith.addf %166, %165 : vector<2x96xf32>
    %168 = arith.divf %166, %167 : vector<2x96xf32>
    %169 = vector.extract_strided_slice %168 {offsets = [0, 0], sizes = [2, 32], strides = [1, 1]} : vector<2x96xf32> to vector<2x32xf32>
    %170 = vector.extract_strided_slice %168 {offsets = [0, 32], sizes = [2, 32], strides = [1, 1]} : vector<2x96xf32> to vector<2x32xf32>
    %171 = vector.extract_strided_slice %168 {offsets = [0, 64], sizes = [2, 32], strides = [1, 1]} : vector<2x96xf32> to vector<2x32xf32>
    %172 = vector.extract_strided_slice %162 {offsets = [0, 96], sizes = [2, 32], strides = [1, 1]} : vector<2x128xf32> to vector<2x32xf32>
    %173 = math.tanh %172 : vector<2x32xf32>
    %174 = arith.mulf %170, %156 : vector<2x32xf32>
    %175 = arith.mulf %169, %173 : vector<2x32xf32>
    %176 = arith.addf %174, %175 : vector<2x32xf32>
    %177 = math.tanh %176 : vector<2x32xf32>
    %178 = arith.mulf %171, %177 : vector<2x32xf32>
    %c14 = arith.constant 14 : index
    %c0_44 = arith.constant 0 : index
    %179 = vector.load %arg15[%c14, %c0_44] : memref<16x32xf32, #tpu.memory_space<vmem>>, vector<2x32xf32>
    tpu.vector_store %arg15[%c14, %c0_44], %178 {strides = array<i32>} : memref<16x32xf32, #tpu.memory_space<vmem>>, vector<2x32xf32>,
    %c0_45 = arith.constant 0 : index
    %c0_46 = arith.constant 0 : index
    %180 = vector.load %arg7[%c0_45, %c0_46] : memref<32x128xf32, #tpu.memory_space<vmem>>, vector<32x128xf32>
    %c0_47 = arith.constant 0 : index
    %c0_48 = arith.constant 0 : index
    %181 = vector.load %arg8[%c0_47, %c0_48] : memref<32x128xf32, #tpu.memory_space<vmem>>, vector<32x128xf32>
    %c0_49 = arith.constant 0 : index
    %c0_50 = arith.constant 0 : index
    %182 = vector.load %arg9[%c0_49, %c0_50] : memref<1x128xf32, #tpu.memory_space<vmem>>, vector<1x128xf32>
    %c0_51 = arith.constant 0 : index
    %c0_52 = arith.constant 0 : index
    %183 = vector.load %arg15[%c0_51, %c0_52] : memref<16x32xf32, #tpu.memory_space<vmem>>, vector<16x32xf32>
    %cst_53 = arith.constant dense<0.000000e+00> : vector<16x128xf32>
    %184 = tpu.matmul %183, %180, %cst_53 {dimension_numbers = #tpu.dot_dimension_numbers<[1], [0], [0], [1], [0, 0, 1, 1], [], []>} : vector<16x32xf32>, vector<32x128xf32>, vector<16x128xf32> -> vector<16x128xf32>
    %185 = vector.broadcast %182 : vector<1x128xf32> to vector<16x128xf32>
    %186 = arith.addf %184, %185 : vector<16x128xf32>
    %c1 = arith.constant 1 : index
    %c0_54 = arith.constant 0 : index
    %c0_55 = arith.constant 0 : index
    %187 = vector.load %arg2[%c1, %c0_54, %c0_55] : memref<2x2x32xf32, #tpu.memory_space<vmem>>, vector<1x2x32xf32>
    %188 = vector.shape_cast %187 : vector<1x2x32xf32> to vector<2x32xf32>
    %c1_56 = arith.constant 1 : index
    %c0_57 = arith.constant 0 : index
    %c0_58 = arith.constant 0 : index
    %189 = vector.load %arg3[%c1_56, %c0_57, %c0_58] : memref<2x2x32xf32, #tpu.memory_space<vmem>>, vector<1x2x32xf32>
    %190 = vector.shape_cast %189 : vector<1x2x32xf32> to vector<2x32xf32>
    %191 = vector.extract_strided_slice %186 {offsets = [0, 0], sizes = [2, 128], strides = [1, 1]} : vector<16x128xf32> to vector<2x128xf32>
    %cst_59 = arith.constant dense<0.000000e+00> : vector<2x128xf32>
    %192 = tpu.matmul %188, %181, %cst_59 {dimension_numbers = #tpu.dot_dimension_numbers<[1], [0], [0], [1], [0, 0, 1, 1], [], []>} : vector<2x32xf32>, vector<32x128xf32>, vector<2x128xf32> -> vector<2x128xf32>
    %193 = arith.addf %191, %192 : vector<2x128xf32>
    %194 = vector.extract_strided_slice %193 {offsets = [0, 0], sizes = [2, 96], strides = [1, 1]} : vector<2x128xf32> to vector<2x96xf32>
    %195 = arith.negf %194 : vector<2x96xf32>
    %196 = math.exp %195 : vector<2x96xf32>
    %cst_60 = arith.constant 1.000000e+00 : f32
    %197 = vector.broadcast %cst_60 : f32 to vector<2x96xf32>
    %198 = arith.addf %197, %196 : vector<2x96xf32>
    %199 = arith.divf %197, %198 : vector<2x96xf32>
    %200 = vector.extract_strided_slice %199 {offsets = [0, 0], sizes = [2, 32], strides = [1, 1]} : vector<2x96xf32> to vector<2x32xf32>
    %201 = vector.extract_strided_slice %199 {offsets = [0, 32], sizes = [2, 32], strides = [1, 1]} : vector<2x96xf32> to vector<2x32xf32>
    %202 = vector.extract_strided_slice %199 {offsets = [0, 64], sizes = [2, 32], strides = [1, 1]} : vector<2x96xf32> to vector<2x32xf32>
    %203 = vector.extract_strided_slice %193 {offsets = [0, 96], sizes = [2, 32], strides = [1, 1]} : vector<2x128xf32> to vector<2x32xf32>
    %204 = math.tanh %203 : vector<2x32xf32>
    %205 = arith.mulf %201, %190 : vector<2x32xf32>
    %206 = arith.mulf %200, %204 : vector<2x32xf32>
    %207 = arith.addf %205, %206 : vector<2x32xf32>
    %208 = math.tanh %207 : vector<2x32xf32>
    %209 = arith.mulf %202, %208 : vector<2x32xf32>
    %210 = vector.extract_strided_slice %186 {offsets = [2, 0], sizes = [2, 128], strides = [1, 1]} : vector<16x128xf32> to vector<2x128xf32>
    %cst_61 = arith.constant dense<0.000000e+00> : vector<2x128xf32>
    %211 = tpu.matmul %209, %181, %cst_61 {dimension_numbers = #tpu.dot_dimension_numbers<[1], [0], [0], [1], [0, 0, 1, 1], [], []>} : vector<2x32xf32>, vector<32x128xf32>, vector<2x128xf32> -> vector<2x128xf32>
    %212 = arith.addf %210, %211 : vector<2x128xf32>
    %213 = vector.extract_strided_slice %212 {offsets = [0, 0], sizes = [2, 96], strides = [1, 1]} : vector<2x128xf32> to vector<2x96xf32>
    %214 = arith.negf %213 : vector<2x96xf32>
    %215 = math.exp %214 : vector<2x96xf32>
    %cst_62 = arith.constant 1.000000e+00 : f32
    %216 = vector.broadcast %cst_62 : f32 to vector<2x96xf32>
    %217 = arith.addf %216, %215 : vector<2x96xf32>
    %218 = arith.divf %216, %217 : vector<2x96xf32>
    %219 = vector.extract_strided_slice %218 {offsets = [0, 0], sizes = [2, 32], strides = [1, 1]} : vector<2x96xf32> to vector<2x32xf32>
    %220 = vector.extract_strided_slice %218 {offsets = [0, 32], sizes = [2, 32], strides = [1, 1]} : vector<2x96xf32> to vector<2x32xf32>
    %221 = vector.extract_strided_slice %218 {offsets = [0, 64], sizes = [2, 32], strides = [1, 1]} : vector<2x96xf32> to vector<2x32xf32>
    %222 = vector.extract_strided_slice %212 {offsets = [0, 96], sizes = [2, 32], strides = [1, 1]} : vector<2x128xf32> to vector<2x32xf32>
    %223 = math.tanh %222 : vector<2x32xf32>
    %224 = arith.mulf %220, %207 : vector<2x32xf32>
    %225 = arith.mulf %219, %223 : vector<2x32xf32>
    %226 = arith.addf %224, %225 : vector<2x32xf32>
    %227 = math.tanh %226 : vector<2x32xf32>
    %228 = arith.mulf %221, %227 : vector<2x32xf32>
    %229 = vector.extract_strided_slice %186 {offsets = [4, 0], sizes = [2, 128], strides = [1, 1]} : vector<16x128xf32> to vector<2x128xf32>
    %cst_63 = arith.constant dense<0.000000e+00> : vector<2x128xf32>
    %230 = tpu.matmul %228, %181, %cst_63 {dimension_numbers = #tpu.dot_dimension_numbers<[1], [0], [0], [1], [0, 0, 1, 1], [], []>} : vector<2x32xf32>, vector<32x128xf32>, vector<2x128xf32> -> vector<2x128xf32>
    %231 = arith.addf %229, %230 : vector<2x128xf32>
    %232 = vector.extract_strided_slice %231 {offsets = [0, 0], sizes = [2, 96], strides = [1, 1]} : vector<2x128xf32> to vector<2x96xf32>
    %233 = arith.negf %232 : vector<2x96xf32>
    %234 = math.exp %233 : vector<2x96xf32>
    %cst_64 = arith.constant 1.000000e+00 : f32
    %235 = vector.broadcast %cst_64 : f32 to vector<2x96xf32>
    %236 = arith.addf %235, %234 : vector<2x96xf32>
    %237 = arith.divf %235, %236 : vector<2x96xf32>
    %238 = vector.extract_strided_slice %237 {offsets = [0, 0], sizes = [2, 32], strides = [1, 1]} : vector<2x96xf32> to vector<2x32xf32>
    %239 = vector.extract_strided_slice %237 {offsets = [0, 32], sizes = [2, 32], strides = [1, 1]} : vector<2x96xf32> to vector<2x32xf32>
    %240 = vector.extract_strided_slice %237 {offsets = [0, 64], sizes = [2, 32], strides = [1, 1]} : vector<2x96xf32> to vector<2x32xf32>
    %241 = vector.extract_strided_slice %231 {offsets = [0, 96], sizes = [2, 32], strides = [1, 1]} : vector<2x128xf32> to vector<2x32xf32>
    %242 = math.tanh %241 : vector<2x32xf32>
    %243 = arith.mulf %239, %226 : vector<2x32xf32>
    %244 = arith.mulf %238, %242 : vector<2x32xf32>
    %245 = arith.addf %243, %244 : vector<2x32xf32>
    %246 = math.tanh %245 : vector<2x32xf32>
    %247 = arith.mulf %240, %246 : vector<2x32xf32>
    %248 = vector.extract_strided_slice %186 {offsets = [6, 0], sizes = [2, 128], strides = [1, 1]} : vector<16x128xf32> to vector<2x128xf32>
    %cst_65 = arith.constant dense<0.000000e+00> : vector<2x128xf32>
    %249 = tpu.matmul %247, %181, %cst_65 {dimension_numbers = #tpu.dot_dimension_numbers<[1], [0], [0], [1], [0, 0, 1, 1], [], []>} : vector<2x32xf32>, vector<32x128xf32>, vector<2x128xf32> -> vector<2x128xf32>
    %250 = arith.addf %248, %249 : vector<2x128xf32>
    %251 = vector.extract_strided_slice %250 {offsets = [0, 0], sizes = [2, 96], strides = [1, 1]} : vector<2x128xf32> to vector<2x96xf32>
    %252 = arith.negf %251 : vector<2x96xf32>
    %253 = math.exp %252 : vector<2x96xf32>
    %cst_66 = arith.constant 1.000000e+00 : f32
    %254 = vector.broadcast %cst_66 : f32 to vector<2x96xf32>
    %255 = arith.addf %254, %253 : vector<2x96xf32>
    %256 = arith.divf %254, %255 : vector<2x96xf32>
    %257 = vector.extract_strided_slice %256 {offsets = [0, 0], sizes = [2, 32], strides = [1, 1]} : vector<2x96xf32> to vector<2x32xf32>
    %258 = vector.extract_strided_slice %256 {offsets = [0, 32], sizes = [2, 32], strides = [1, 1]} : vector<2x96xf32> to vector<2x32xf32>
    %259 = vector.extract_strided_slice %256 {offsets = [0, 64], sizes = [2, 32], strides = [1, 1]} : vector<2x96xf32> to vector<2x32xf32>
    %260 = vector.extract_strided_slice %250 {offsets = [0, 96], sizes = [2, 32], strides = [1, 1]} : vector<2x128xf32> to vector<2x32xf32>
    %261 = math.tanh %260 : vector<2x32xf32>
    %262 = arith.mulf %258, %245 : vector<2x32xf32>
    %263 = arith.mulf %257, %261 : vector<2x32xf32>
    %264 = arith.addf %262, %263 : vector<2x32xf32>
    %265 = math.tanh %264 : vector<2x32xf32>
    %266 = arith.mulf %259, %265 : vector<2x32xf32>
    %267 = vector.extract_strided_slice %186 {offsets = [8, 0], sizes = [2, 128], strides = [1, 1]} : vector<16x128xf32> to vector<2x128xf32>
    %cst_67 = arith.constant dense<0.000000e+00> : vector<2x128xf32>
    %268 = tpu.matmul %266, %181, %cst_67 {dimension_numbers = #tpu.dot_dimension_numbers<[1], [0], [0], [1], [0, 0, 1, 1], [], []>} : vector<2x32xf32>, vector<32x128xf32>, vector<2x128xf32> -> vector<2x128xf32>
    %269 = arith.addf %267, %268 : vector<2x128xf32>
    %270 = vector.extract_strided_slice %269 {offsets = [0, 0], sizes = [2, 96], strides = [1, 1]} : vector<2x128xf32> to vector<2x96xf32>
    %271 = arith.negf %270 : vector<2x96xf32>
    %272 = math.exp %271 : vector<2x96xf32>
    %cst_68 = arith.constant 1.000000e+00 : f32
    %273 = vector.broadcast %cst_68 : f32 to vector<2x96xf32>
    %274 = arith.addf %273, %272 : vector<2x96xf32>
    %275 = arith.divf %273, %274 : vector<2x96xf32>
    %276 = vector.extract_strided_slice %275 {offsets = [0, 0], sizes = [2, 32], strides = [1, 1]} : vector<2x96xf32> to vector<2x32xf32>
    %277 = vector.extract_strided_slice %275 {offsets = [0, 32], sizes = [2, 32], strides = [1, 1]} : vector<2x96xf32> to vector<2x32xf32>
    %278 = vector.extract_strided_slice %275 {offsets = [0, 64], sizes = [2, 32], strides = [1, 1]} : vector<2x96xf32> to vector<2x32xf32>
    %279 = vector.extract_strided_slice %269 {offsets = [0, 96], sizes = [2, 32], strides = [1, 1]} : vector<2x128xf32> to vector<2x32xf32>
    %280 = math.tanh %279 : vector<2x32xf32>
    %281 = arith.mulf %277, %264 : vector<2x32xf32>
    %282 = arith.mulf %276, %280 : vector<2x32xf32>
    %283 = arith.addf %281, %282 : vector<2x32xf32>
    %284 = math.tanh %283 : vector<2x32xf32>
    %285 = arith.mulf %278, %284 : vector<2x32xf32>
    %286 = vector.extract_strided_slice %186 {offsets = [10, 0], sizes = [2, 128], strides = [1, 1]} : vector<16x128xf32> to vector<2x128xf32>
    %cst_69 = arith.constant dense<0.000000e+00> : vector<2x128xf32>
    %287 = tpu.matmul %285, %181, %cst_69 {dimension_numbers = #tpu.dot_dimension_numbers<[1], [0], [0], [1], [0, 0, 1, 1], [], []>} : vector<2x32xf32>, vector<32x128xf32>, vector<2x128xf32> -> vector<2x128xf32>
    %288 = arith.addf %286, %287 : vector<2x128xf32>
    %289 = vector.extract_strided_slice %288 {offsets = [0, 0], sizes = [2, 96], strides = [1, 1]} : vector<2x128xf32> to vector<2x96xf32>
    %290 = arith.negf %289 : vector<2x96xf32>
    %291 = math.exp %290 : vector<2x96xf32>
    %cst_70 = arith.constant 1.000000e+00 : f32
    %292 = vector.broadcast %cst_70 : f32 to vector<2x96xf32>
    %293 = arith.addf %292, %291 : vector<2x96xf32>
    %294 = arith.divf %292, %293 : vector<2x96xf32>
    %295 = vector.extract_strided_slice %294 {offsets = [0, 0], sizes = [2, 32], strides = [1, 1]} : vector<2x96xf32> to vector<2x32xf32>
    %296 = vector.extract_strided_slice %294 {offsets = [0, 32], sizes = [2, 32], strides = [1, 1]} : vector<2x96xf32> to vector<2x32xf32>
    %297 = vector.extract_strided_slice %294 {offsets = [0, 64], sizes = [2, 32], strides = [1, 1]} : vector<2x96xf32> to vector<2x32xf32>
    %298 = vector.extract_strided_slice %288 {offsets = [0, 96], sizes = [2, 32], strides = [1, 1]} : vector<2x128xf32> to vector<2x32xf32>
    %299 = math.tanh %298 : vector<2x32xf32>
    %300 = arith.mulf %296, %283 : vector<2x32xf32>
    %301 = arith.mulf %295, %299 : vector<2x32xf32>
    %302 = arith.addf %300, %301 : vector<2x32xf32>
    %303 = math.tanh %302 : vector<2x32xf32>
    %304 = arith.mulf %297, %303 : vector<2x32xf32>
    %305 = vector.extract_strided_slice %186 {offsets = [12, 0], sizes = [2, 128], strides = [1, 1]} : vector<16x128xf32> to vector<2x128xf32>
    %cst_71 = arith.constant dense<0.000000e+00> : vector<2x128xf32>
    %306 = tpu.matmul %304, %181, %cst_71 {dimension_numbers = #tpu.dot_dimension_numbers<[1], [0], [0], [1], [0, 0, 1, 1], [], []>} : vector<2x32xf32>, vector<32x128xf32>, vector<2x128xf32> -> vector<2x128xf32>
    %307 = arith.addf %305, %306 : vector<2x128xf32>
    %308 = vector.extract_strided_slice %307 {offsets = [0, 0], sizes = [2, 96], strides = [1, 1]} : vector<2x128xf32> to vector<2x96xf32>
    %309 = arith.negf %308 : vector<2x96xf32>
    %310 = math.exp %309 : vector<2x96xf32>
    %cst_72 = arith.constant 1.000000e+00 : f32
    %311 = vector.broadcast %cst_72 : f32 to vector<2x96xf32>
    %312 = arith.addf %311, %310 : vector<2x96xf32>
    %313 = arith.divf %311, %312 : vector<2x96xf32>
    %314 = vector.extract_strided_slice %313 {offsets = [0, 0], sizes = [2, 32], strides = [1, 1]} : vector<2x96xf32> to vector<2x32xf32>
    %315 = vector.extract_strided_slice %313 {offsets = [0, 32], sizes = [2, 32], strides = [1, 1]} : vector<2x96xf32> to vector<2x32xf32>
    %316 = vector.extract_strided_slice %313 {offsets = [0, 64], sizes = [2, 32], strides = [1, 1]} : vector<2x96xf32> to vector<2x32xf32>
    %317 = vector.extract_strided_slice %307 {offsets = [0, 96], sizes = [2, 32], strides = [1, 1]} : vector<2x128xf32> to vector<2x32xf32>
    %318 = math.tanh %317 : vector<2x32xf32>
    %319 = arith.mulf %315, %302 : vector<2x32xf32>
    %320 = arith.mulf %314, %318 : vector<2x32xf32>
    %321 = arith.addf %319, %320 : vector<2x32xf32>
    %322 = math.tanh %321 : vector<2x32xf32>
    %323 = arith.mulf %316, %322 : vector<2x32xf32>
    %324 = vector.extract_strided_slice %186 {offsets = [14, 0], sizes = [2, 128], strides = [1, 1]} : vector<16x128xf32> to vector<2x128xf32>
    %cst_73 = arith.constant dense<0.000000e+00> : vector<2x128xf32>
    %325 = tpu.matmul %323, %181, %cst_73 {dimension_numbers = #tpu.dot_dimension_numbers<[1], [0], [0], [1], [0, 0, 1, 1], [], []>} : vector<2x32xf32>, vector<32x128xf32>, vector<2x128xf32> -> vector<2x128xf32>
    %326 = arith.addf %324, %325 : vector<2x128xf32>
    %327 = vector.extract_strided_slice %326 {offsets = [0, 0], sizes = [2, 96], strides = [1, 1]} : vector<2x128xf32> to vector<2x96xf32>
    %328 = arith.negf %327 : vector<2x96xf32>
    %329 = math.exp %328 : vector<2x96xf32>
    %cst_74 = arith.constant 1.000000e+00 : f32
    %330 = vector.broadcast %cst_74 : f32 to vector<2x96xf32>
    %331 = arith.addf %330, %329 : vector<2x96xf32>
    %332 = arith.divf %330, %331 : vector<2x96xf32>
    %333 = vector.extract_strided_slice %332 {offsets = [0, 0], sizes = [2, 32], strides = [1, 1]} : vector<2x96xf32> to vector<2x32xf32>
    %334 = vector.extract_strided_slice %332 {offsets = [0, 32], sizes = [2, 32], strides = [1, 1]} : vector<2x96xf32> to vector<2x32xf32>
    %335 = vector.extract_strided_slice %332 {offsets = [0, 64], sizes = [2, 32], strides = [1, 1]} : vector<2x96xf32> to vector<2x32xf32>
    %336 = vector.extract_strided_slice %326 {offsets = [0, 96], sizes = [2, 32], strides = [1, 1]} : vector<2x128xf32> to vector<2x32xf32>
    %337 = math.tanh %336 : vector<2x32xf32>
    %338 = arith.mulf %334, %321 : vector<2x32xf32>
    %339 = arith.mulf %333, %337 : vector<2x32xf32>
    %340 = arith.addf %338, %339 : vector<2x32xf32>
    %341 = math.tanh %340 : vector<2x32xf32>
    %342 = arith.mulf %335, %341 : vector<2x32xf32>
    %c0_75 = arith.constant 0 : index
    %c0_76 = arith.constant 0 : index
    %343 = vector.load %arg10[%c0_75, %c0_76] : memref<32x24xf32, #tpu.memory_space<vmem>>, vector<32x24xf32>
    %cst_77 = arith.constant dense<0.000000e+00> : vector<2x24xf32>
    %344 = tpu.matmul %342, %343, %cst_77 {dimension_numbers = #tpu.dot_dimension_numbers<[1], [0], [0], [1], [0, 0, 1, 1], [], []>} : vector<2x32xf32>, vector<32x24xf32>, vector<2x24xf32> -> vector<2x24xf32>
    %c0_78 = arith.constant 0 : index
    %c0_79 = arith.constant 0 : index
    %345 = vector.load %arg11[%c0_78, %c0_79] : memref<1x24xf32, #tpu.memory_space<vmem>>, vector<1x24xf32>
    %346 = vector.broadcast %345 : vector<1x24xf32> to vector<2x24xf32>
    %347 = arith.addf %344, %346 : vector<2x24xf32>
    %cst_80 = arith.constant 0.000000e+00 : f32
    %348 = vector.broadcast %cst_80 : f32 to vector<2x24xf32>
    %349 = arith.maximumf %347, %348 : vector<2x24xf32>
    %c0_81 = arith.constant 0 : index
    %c0_82 = arith.constant 0 : index
    %350 = vector.load %arg12[%c0_81, %c0_82] : memref<24x1xf32, #tpu.memory_space<vmem>>, vector<24x1xf32>
    %cst_83 = arith.constant dense<0.000000e+00> : vector<2x1xf32>
    %351 = tpu.matmul %349, %350, %cst_83 {dimension_numbers = #tpu.dot_dimension_numbers<[1], [0], [0], [1], [0, 0, 1, 1], [], []>} : vector<2x24xf32>, vector<24x1xf32>, vector<2x1xf32> -> vector<2x1xf32>
    %c0_84 = arith.constant 0 : index
    %c0_85 = arith.constant 0 : index
    %352 = vector.load %arg13[%c0_84, %c0_85] : memref<1x1xf32, #tpu.memory_space<vmem>>, vector<1x1xf32>
    %353 = vector.broadcast %352 : vector<1x1xf32> to vector<2x1xf32>
    %354 = arith.addf %351, %353 : vector<2x1xf32>
    %355 = arith.negf %354 : vector<2x1xf32>
    %356 = math.exp %355 : vector<2x1xf32>
    %cst_86 = arith.constant 1.000000e+00 : f32
    %357 = vector.broadcast %cst_86 : f32 to vector<2x1xf32>
    %358 = arith.addf %357, %356 : vector<2x1xf32>
    %359 = arith.divf %357, %358 : vector<2x1xf32>
    %c0_87 = arith.constant 0 : index
    %c0_88 = arith.constant 0 : index
    %360 = vector.load %arg14[%c0_87, %c0_88] : memref<2x1xf32, #tpu.memory_space<vmem>>, vector<2x1xf32>
    tpu.vector_store %arg14[%c0_87, %c0_88], %359 {strides = array<i32>} : memref<2x1xf32, #tpu.memory_space<vmem>>, vector<2x1xf32>,
    return
  }
}

</mosaic_0001>

<llo_original>
// kernel: tpu_custom_call.1
$region0: #{tpu_custom_call.1}
  #allocation0 [shape = 'u32[]', space=smem, size = 0x4, offset = 0x4, fixed_abs, tag = 'smem constant byte address 0x4 - core index']
  #allocation1 [shape = 'u32[72,128]{1,0:T(1,128)}', space=vmem, size = 0x9000, scoped, tag = 'internal scratch']
  #allocation2 [shape = 'f32[16,32]{1,0:T(8,128)}', space=vmem, size = 0x2000, scoped, tag = 'scratch operand']
  #allocation3 [shape = 'f32[1,1]{1,0:T(1,128)S(1)}', space=vmem, size = 0x200, scoped, tag = 'scoped memory for tpu_custom_call.1']
  %s0 = inlined_call_operand.vmem [shape: s32[16,1], index: 0, kind: input, shape index: {}]
  %s1 = inlined_call_operand.vmem [shape: f32[128,32], index: 1, kind: input, shape index: {}]
  %s2 = inlined_call_operand.vmem [shape: f32[2,2,32], index: 2, kind: input, shape index: {}]
  %s3 = inlined_call_operand.vmem [shape: f32[2,2,32], index: 3, kind: input, shape index: {}]
  %s4 = inlined_call_operand.vmem [shape: f32[32,128], index: 4, kind: input, shape index: {}]
  %s5 = inlined_call_operand.vmem [shape: f32[32,128], index: 5, kind: input, shape index: {}]
  %s6 = inlined_call_operand.vmem [shape: f32[1,128], index: 6, kind: input, shape index: {}]
  %s7 = inlined_call_operand.vmem [shape: f32[32,128], index: 7, kind: input, shape index: {}]
  %s8 = inlined_call_operand.vmem [shape: f32[32,128], index: 8, kind: input, shape index: {}]
  %s9 = inlined_call_operand.vmem [shape: f32[1,128], index: 9, kind: input, shape index: {}]
  %s10 = inlined_call_operand.vmem [shape: f32[32,24], index: 10, kind: input, shape index: {}]
  %s11 = inlined_call_operand.vmem [shape: f32[1,24], index: 11, kind: input, shape index: {}]
  %s12 = inlined_call_operand.vmem [shape: f32[24,1], index: 12, kind: input, shape index: {}]
  %s13 = inlined_call_operand.<no memory space> [shape: f32[1,1], index: 13, kind: input, shape index: {}]
  %s14 = inlined_call_operand.vmem [shape: f32[2,1], index: 14, kind: output, shape index: {}]
  %s15 = sld [smem:[#allocation0]]
  $region66: #{tpu_custom_call.1} parent=0
    _
  %s17 = ssub.s32 1, %s15
  %s18 = scalar_select 0, %s17, %s15
  %v19 = vstv %s13
  %20 = vst [vmem:[#allocation3] sm:$0x1] %v19
  // Predicated region
  $region2: #{tpu_custom_call.1} parent=0 // pred_check
    _
  $region3: #{tpu_custom_call.1} parent=0 // pred_check_branch
    %22 = sbr.rel (0) target = $region5
  $region4: #{tpu_custom_call.1} parent=0 // pred_region
    _
  $region5: #{tpu_custom_call.1} parent=0 // pred_fallthru
    _
  // Predicated region
  $region6: #{tpu_custom_call.1} parent=0 // pred_check
    _
  $region7: #{tpu_custom_call.1} parent=0 // pred_check_branch
    %24 = sbr.rel (0) target = $region9
  $region8: #{tpu_custom_call.1} parent=0 // pred_region
    _
  $region9: #{tpu_custom_call.1} parent=0 // pred_fallthru
    _
  // Predicated region
  $region10: #{tpu_custom_call.1} parent=0 // pred_check
    _
  $region11: #{tpu_custom_call.1} parent=0 // pred_check_branch
    %26 = sbr.rel (0) target = $region13
  $region12: #{tpu_custom_call.1} parent=0 // pred_region
    _
  $region13: #{tpu_custom_call.1} parent=0 // pred_fallthru
    _
  // Predicated region
  $region14: #{tpu_custom_call.1} parent=0 // pred_check
    _
  $region15: #{tpu_custom_call.1} parent=0 // pred_check_branch
    %28 = sbr.rel (0) target = $region17
  $region16: #{tpu_custom_call.1} parent=0 // pred_region
    _
  $region17: #{tpu_custom_call.1} parent=0 // pred_fallthru
    _
  // Predicated region
  $region18: #{tpu_custom_call.1} parent=0 // pred_check
    _
  $region19: #{tpu_custom_call.1} parent=0 // pred_check_branch
    %30 = sbr.rel (0) target = $region21
  $region20: #{tpu_custom_call.1} parent=0 // pred_region
    _
  $region21: #{tpu_custom_call.1} parent=0 // pred_fallthru
    _
  // Predicated region
  $region22: #{tpu_custom_call.1} parent=0 // pred_check
    _
  $region23: #{tpu_custom_call.1} parent=0 // pred_check_branch
    %32 = sbr.rel (0) target = $region25
  $region24: #{tpu_custom_call.1} parent=0 // pred_region
    _
  $region25: #{tpu_custom_call.1} parent=0 // pred_fallthru
    _
  // Predicated region
  $region26: #{tpu_custom_call.1} parent=0 // pred_check
    _
  $region27: #{tpu_custom_call.1} parent=0 // pred_check_branch
    %34 = sbr.rel (0) target = $region29
  $region28: #{tpu_custom_call.1} parent=0 // pred_region
    _
  $region29: #{tpu_custom_call.1} parent=0 // pred_fallthru
    _
  // Predicated region
  $region30: #{tpu_custom_call.1} parent=0 // pred_check
    _
  $region31: #{tpu_custom_call.1} parent=0 // pred_check_branch
    %36 = sbr.rel (0) target = $region33
  $region32: #{tpu_custom_call.1} parent=0 // pred_region
    _
  $region33: #{tpu_custom_call.1} parent=0 // pred_fallthru
    _
  // Predicated region
  $region34: #{tpu_custom_call.1} parent=0 // pred_check
    _
  $region35: #{tpu_custom_call.1} parent=0 // pred_check_branch
    %38 = sbr.rel (0) target = $region37
  $region36: #{tpu_custom_call.1} parent=0 // pred_region
    _
  $region37: #{tpu_custom_call.1} parent=0 // pred_fallthru
    _
  // Predicated region
  $region38: #{tpu_custom_call.1} parent=0 // pred_check
    _
  $region39: #{tpu_custom_call.1} parent=0 // pred_check_branch
    %40 = sbr.rel (0) target = $region41
  $region40: #{tpu_custom_call.1} parent=0 // pred_region
    _
  $region41: #{tpu_custom_call.1} parent=0 // pred_fallthru
    _
  // Predicated region
  $region42: #{tpu_custom_call.1} parent=0 // pred_check
    _
  $region43: #{tpu_custom_call.1} parent=0 // pred_check_branch
    %42 = sbr.rel (0) target = $region45
  $region44: #{tpu_custom_call.1} parent=0 // pred_region
    _
  $region45: #{tpu_custom_call.1} parent=0 // pred_fallthru
    _
  // Predicated region
  $region46: #{tpu_custom_call.1} parent=0 // pred_check
    _
  $region47: #{tpu_custom_call.1} parent=0 // pred_check_branch
    %44 = sbr.rel (0) target = $region49
  $region48: #{tpu_custom_call.1} parent=0 // pred_region
    _
  $region49: #{tpu_custom_call.1} parent=0 // pred_fallthru
    _
  // Predicated region
  $region50: #{tpu_custom_call.1} parent=0 // pred_check
    _
  $region51: #{tpu_custom_call.1} parent=0 // pred_check_branch
    %46 = sbr.rel (0) target = $region53
  $region52: #{tpu_custom_call.1} parent=0 // pred_region
    _
  $region53: #{tpu_custom_call.1} parent=0 // pred_fallthru
    _
  // Predicated region
  $region54: #{tpu_custom_call.1} parent=0 // pred_check
    _
  $region55: #{tpu_custom_call.1} parent=0 // pred_check_branch
    %48 = sbr.rel (0) target = $region57
  $region56: #{tpu_custom_call.1} parent=0 // pred_region
    _
  $region57: #{tpu_custom_call.1} parent=0 // pred_fallthru
    _
  %v49 = vld [vmem:[%s0] sm:$0xff]
  %v50 = vld [vmem:[%s0 + $0x8] sm:$0xff]
  %v51 = vlaneseq
  %v52 = vand.u32 %v51, 127
  %53 = vset.pattern.permute.xlu0 0
  %54 = vperm.xlu0 %53, %v49
  %v55 = vpop.permute.xlu0 %54
  %56 = vset.pattern.permute.xlu0 0
  %57 = vperm.xlu0 %56, %v50
  %v58 = vpop.permute.xlu0 %57
  %vm59 = vcmp.eq.s32.totalorder %v55, %v52
  %vm60 = vcmp.eq.s32.totalorder %v58, %v52
  %v61 = vsel %vm59, 1, 0
  %v62 = vsel %vm60, 1, 0
  %v63 = vcvt.s32.f32 %v61
  %v64 = vcvt.s32.f32 %v62
  %v65 = vld [vmem:[%s1] sm:$0xff]
  %v66 = vld [vmem:[%s1 + $0x8] sm:$0xff]
  %v67 = vld [vmem:[%s1 + $0x10] sm:$0xff]
  %v68 = vld [vmem:[%s1 + $0x18] sm:$0xff]
  %v69 = vld [vmem:[%s1 + $0x20] sm:$0xff]
  %v70 = vld [vmem:[%s1 + $0x28] sm:$0xff]
  %v71 = vld [vmem:[%s1 + $0x30] sm:$0xff]
  %v72 = vld [vmem:[%s1 + $0x38] sm:$0xff]
  %v73 = vld [vmem:[%s1 + $0x40] sm:$0xff]
  %v74 = vld [vmem:[%s1 + $0x48] sm:$0xff]
  %v75 = vld [vmem:[%s1 + $0x50] sm:$0xff]
  %v76 = vld [vmem:[%s1 + $0x58] sm:$0xff]
  %v77 = vld [vmem:[%s1 + $0x60] sm:$0xff]
  %v78 = vld [vmem:[%s1 + $0x68] sm:$0xff]
  %v79 = vld [vmem:[%s1 + $0x70] sm:$0xff]
  %v80 = vld [vmem:[%s1 + $0x78] sm:$0xff]
  %81 = vmatpush.msra.mxu0 %v80
  %82 = vmatpush.msra.mxu0 %v79
  %83 = vmatpush.msra.mxu0 %v78
  %84 = vmatpush.msra.mxu0 %v77
  %85 = vmatpush.msra.mxu0 %v76
  %86 = vmatpush.msra.mxu0 %v75
  %87 = vmatpush.msra.mxu0 %v74
  %88 = vmatpush.msra.mxu0 %v73
  %89 = vmatpush.msra.mxu0 %v72
  %90 = vmatpush.msra.mxu0 %v71
  %91 = vmatpush.msra.mxu0 %v70
  %92 = vmatpush.msra.mxu0 %v69
  %93 = vmatpush.msra.mxu0 %v68
  %94 = vmatpush.msra.mxu0 %v67
  %95 = vmatpush.msra.mxu0 %v66
  %96 = vmatpush.msra.mxu0 %v65
  %97 = vmatmul.f32.gmra.mxu0 %v63
  %v98 = vpop.f32.mrf.mxu0
  %v99 = vadd.f32 0.0, %v98
  %100 = vmatmul.f32.gmra.mxu0 %v64
  %v101 = vpop.f32.mrf.mxu0
  %v102 = vadd.f32 0.0, %v101
  %103 = vdwg.mxu0
  %vm104 = vcmask 261120
  %105 = vst.msk [vmem:[#allocation2] sm:$0xff] %vm104, %v99
  %106 = vst.msk [vmem:[#allocation2 + $0x8] sm:$0xff] %vm104, %v102
  %v107 = vld [vmem:[%s4] sm:$0xff]
  %v108 = vld [vmem:[%s4 + $0x8] sm:$0xff]
  %v109 = vld [vmem:[%s4 + $0x10] sm:$0xff]
  %v110 = vld [vmem:[%s4 + $0x18] sm:$0xff]
  %v111 = vld [vmem:[%s5] sm:$0xff]
  %v112 = vld [vmem:[%s5 + $0x8] sm:$0xff]
  %v113 = vld [vmem:[%s5 + $0x10] sm:$0xff]
  %v114 = vld [vmem:[%s5 + $0x18] sm:$0xff]
  %v115 = vld [vmem:[%s6] sm:$0x1]
  %v116 = vld [vmem:[#allocation2] sm:$0xff]
  %v117 = vld [vmem:[#allocation2 + $0x8] sm:$0xff]
  %v119 = vperm.slane %v115, 0
  %v122 = vsel %vm104, %v116, 0
  %v125 = vsel %vm104, %v117, 0
  %127 = vmatpush.msra.mxu0 0.0
  %128 = vmatpush.msra.mxu0 0.0
  %129 = vmatpush.msra.mxu0 0.0
  %130 = vmatpush.msra.mxu0 0.0
  %131 = vmatpush.msra.mxu0 0.0
  %132 = vmatpush.msra.mxu0 0.0
  %133 = vmatpush.msra.mxu0 0.0
  %134 = vmatpush.msra.mxu0 0.0
  %135 = vmatpush.msra.mxu0 0.0
  %136 = vmatpush.msra.mxu0 0.0
  %137 = vmatpush.msra.mxu0 0.0
  %138 = vmatpush.msra.mxu0 0.0
  %139 = vmatpush.msra.mxu0 %v110
  %140 = vmatpush.msra.mxu0 %v109
  %141 = vmatpush.msra.mxu0 %v108
  %142 = vmatpush.msra.mxu0 %v107
  %143 = vmatmul.f32.gmra.mxu0 %v122
  %v144 = vpop.f32.mrf.mxu0
  %v145 = vadd.f32 %v119, %v144
  %146 = vmatmul.f32.gmra.mxu0 %v125
  %v147 = vpop.f32.mrf.mxu0
  %v148 = vadd.f32 %v119, %v147
  %149 = vdwg.mxu0
  %v150 = vld [vmem:[%s2] sm:$0x3]
  %v151 = vld [vmem:[%s3] sm:$0x3]
  %v153 = vsel %vm104, %v150, 0
  %155 = vmatpush.msra.mxu0 0.0
  %156 = vmatpush.msra.mxu0 0.0
  %157 = vmatpush.msra.mxu0 0.0
  %158 = vmatpush.msra.mxu0 0.0
  %159 = vmatpush.msra.mxu0 0.0
  %160 = vmatpush.msra.mxu0 0.0
  %161 = vmatpush.msra.mxu0 0.0
  %162 = vmatpush.msra.mxu0 0.0
  %163 = vmatpush.msra.mxu0 0.0
  %164 = vmatpush.msra.mxu0 0.0
  %165 = vmatpush.msra.mxu0 0.0
  %166 = vmatpush.msra.mxu0 0.0
  %167 = vmatpush.msra.mxu0 %v114
  %168 = vmatpush.msra.mxu0 %v113
  %169 = vmatpush.msra.mxu0 %v112
  %170 = vmatpush.msra.mxu0 %v111
  %171 = vmatmul.f32.gmra.mxu0 %v153
  %v172 = vpop.f32.mrf.mxu0
  %v173 = vadd.f32 0.0, %v172
  %174 = vdwg.mxu0
  %v175 = vadd.f32 %v145, %v173
  %v176 = vxor.u32 %v175, 2147483648
  %v177 = vmul.f32 %v176, 1.442695
  %v178 = vpow.pop %v177
  %v179 = vadd.f32 %v178, 1.0
  %v180 = vrcp.pop %v179
  %v181 = vmul.f32 %v179, %v180
  %v182 = vsub.f32 1.0, %v181
  %v183 = vmul.f32 %v180, %v182
  %v184 = vadd.f32 %v180, %v183
  %vm185 = vweird.f32 %v179
  %vm186 = vweird.f32 %v180
  %vm187 = vmor %vm185, %vm186
  %v188 = vsel %vm187, %v180, %v184
  %v189 = vand.u32 2147483647, %v179
  %vm190 = vcmp.eq.f32.partialorder %v189, 8.507059e+37
  %v191 = vand.u32 %v179, 2147483648
  %v192 = vor.u32 1.1754944e-38, %v191
  %v193 = vsel %vm190, %v192, %v188
  %v194 = vmul.f32 1.0, %v193
  %v195 = vtanh.pop %v175
  %197 = vrot.lane.b32.xlu0 %v151, 32
  %v198 = vpop.permute.xlu0 %197
  %v200 = vmul.f32 %v194, %v198
  %202 = vrot.lane.b32.xlu0 %v195, 32
  %v203 = vpop.permute.xlu0 %202
  %v205 = vmul.f32 %v194, %v203
  %207 = vrot.lane.b32.xlu0 %v205, 32
  %v208 = vpop.permute.xlu0 %207
  %v210 = vadd.f32 %v200, %v208
  %v211 = vtanh.pop %v210
  %213 = vrot.lane.b32.xlu0 %v211, 32
  %v214 = vpop.permute.xlu0 %213
  %v216 = vmul.f32 %v194, %v214
  %218 = vrot.lane.b32.xlu0 %v216, 64
  %v219 = vpop.permute.xlu0 %218
  %vm221 = vcmask 254976
  %222 = vst.msk [vmem:[#allocation2] sm:$0x3] %vm221, %v219
  %v223 = vsel %vm104, %v219, 0
  %225 = vmatpush.msra.mxu0 0.0
  %226 = vmatpush.msra.mxu0 0.0
  %227 = vmatpush.msra.mxu0 0.0
  %228 = vmatpush.msra.mxu0 0.0
  %229 = vmatpush.msra.mxu0 0.0
  %230 = vmatpush.msra.mxu0 0.0
  %231 = vmatpush.msra.mxu0 0.0
  %232 = vmatpush.msra.mxu0 0.0
  %233 = vmatpush.msra.mxu0 0.0
  %234 = vmatpush.msra.mxu0 0.0
  %235 = vmatpush.msra.mxu0 0.0
  %236 = vmatpush.msra.mxu0 0.0
  %237 = vmatpush.msra.mxu0 %v114
  %238 = vmatpush.msra.mxu0 %v113
  %239 = vmatpush.msra.mxu0 %v112
  %240 = vmatpush.msra.mxu0 %v111
  %241 = vmatmul.f32.gmra.mxu0 %v223
  %v242 = vpop.f32.mrf.mxu0
  %v243 = vadd.f32 0.0, %v242
  %244 = vdwg.mxu0
  %v246 = vrot.slane %v243, 6
  %v248 = vadd.f32 %v145, %v246
  %v249 = vxor.u32 %v248, 2147483648
  %v250 = vmul.f32 %v249, 1.442695
  %v251 = vpow.pop %v250
  %v252 = vadd.f32 %v251, 1.0
  %v253 = vrcp.pop %v252
  %v254 = vmul.f32 %v252, %v253
  %v255 = vsub.f32 1.0, %v254
  %v256 = vmul.f32 %v253, %v255
  %v257 = vadd.f32 %v253, %v256
  %vm258 = vweird.f32 %v252
  %vm259 = vweird.f32 %v253
  %vm260 = vmor %vm258, %vm259
  %v261 = vsel %vm260, %v253, %v257
  %v262 = vand.u32 2147483647, %v252
  %vm263 = vcmp.eq.f32.partialorder %v262, 8.507059e+37
  %v264 = vand.u32 %v252, 2147483648
  %v265 = vor.u32 1.1754944e-38, %v264
  %v266 = vsel %vm263, %v265, %v261
  %v267 = vmul.f32 1.0, %v266
  %v268 = vtanh.pop %v248
  %v270 = vrot.slane %v210, 6
  %v272 = vmul.f32 %v267, %v270
  %274 = vrot.lane.b32.xlu0 %v268, 32
  %v275 = vpop.permute.xlu0 %274
  %v277 = vmul.f32 %v267, %v275
  %279 = vrot.lane.b32.xlu0 %v277, 32
  %v280 = vpop.permute.xlu0 %279
  %v282 = vadd.f32 %v272, %v280
  %v283 = vtanh.pop %v282
  %285 = vrot.lane.b32.xlu0 %v283, 32
  %v286 = vpop.permute.xlu0 %285
  %v288 = vmul.f32 %v267, %v286
  %290 = vrot.lane.b32.xlu0 %v288, 64
  %v291 = vpop.permute.xlu0 %290
  %vm293 = vcmask 257026
  %294 = vst.msk [vmem:[#allocation2] sm:$0xc] %vm293, %v291
  %v295 = vrot.slane %v288, 2
  %296 = vrot.lane.b32.xlu0 %v295, 64
  %v297 = vpop.permute.xlu0 %296
  %v298 = vsel %vm104, %v297, 0
  %300 = vmatpush.msra.mxu0 0.0
  %301 = vmatpush.msra.mxu0 0.0
  %302 = vmatpush.msra.mxu0 0.0
  %303 = vmatpush.msra.mxu0 0.0
  %304 = vmatpush.msra.mxu0 0.0
  %305 = vmatpush.msra.mxu0 0.0
  %306 = vmatpush.msra.mxu0 0.0
  %307 = vmatpush.msra.mxu0 0.0
  %308 = vmatpush.msra.mxu0 0.0
  %309 = vmatpush.msra.mxu0 0.0
  %310 = vmatpush.msra.mxu0 0.0
  %311 = vmatpush.msra.mxu0 0.0
  %312 = vmatpush.msra.mxu0 %v114
  %313 = vmatpush.msra.mxu0 %v113
  %314 = vmatpush.msra.mxu0 %v112
  %315 = vmatpush.msra.mxu0 %v111
  %316 = vmatmul.f32.gmra.mxu0 %v298
  %v317 = vpop.f32.mrf.mxu0
  %v318 = vadd.f32 0.0, %v317
  %319 = vdwg.mxu0
  %v321 = vrot.slane %v318, 4
  %v323 = vadd.f32 %v145, %v321
  %v324 = vxor.u32 %v323, 2147483648
  %v325 = vmul.f32 %v324, 1.442695
  %v326 = vpow.pop %v325
  %v327 = vadd.f32 %v326, 1.0
  %v328 = vrcp.pop %v327
  %v329 = vmul.f32 %v327, %v328
  %v330 = vsub.f32 1.0, %v329
  %v331 = vmul.f32 %v328, %v330
  %v332 = vadd.f32 %v328, %v331
  %vm333 = vweird.f32 %v327
  %vm334 = vweird.f32 %v328
  %vm335 = vmor %vm333, %vm334
  %v336 = vsel %vm335, %v328, %v332
  %v337 = vand.u32 2147483647, %v327
  %vm338 = vcmp.eq.f32.partialorder %v337, 8.507059e+37
  %v339 = vand.u32 %v327, 2147483648
  %v340 = vor.u32 1.1754944e-38, %v339
  %v341 = vsel %vm338, %v340, %v336
  %v342 = vmul.f32 1.0, %v341
  %v343 = vtanh.pop %v323
  %v345 = vrot.slane %v282, 6
  %v347 = vmul.f32 %v342, %v345
  %349 = vrot.lane.b32.xlu0 %v343, 32
  %v350 = vpop.permute.xlu0 %349
  %v352 = vmul.f32 %v342, %v350
  %354 = vrot.lane.b32.xlu0 %v352, 32
  %v355 = vpop.permute.xlu0 %354
  %v357 = vadd.f32 %v347, %v355
  %v358 = vtanh.pop %v357
  %360 = vrot.lane.b32.xlu0 %v358, 32
  %v361 = vpop.permute.xlu0 %360
  %v363 = vmul.f32 %v342, %v361
  %365 = vrot.lane.b32.xlu0 %v363, 64
  %v366 = vpop.permute.xlu0 %365
  %vm368 = vcmask 259076
  %369 = vst.msk [vmem:[#allocation2] sm:$0x30] %vm368, %v366
  %v370 = vrot.slane %v363, 4
  %371 = vrot.lane.b32.xlu0 %v370, 64
  %v372 = vpop.permute.xlu0 %371
  %v373 = vsel %vm104, %v372, 0
  %375 = vmatpush.msra.mxu0 0.0
  %376 = vmatpush.msra.mxu0 0.0
  %377 = vmatpush.msra.mxu0 0.0
  %378 = vmatpush.msra.mxu0 0.0
  %379 = vmatpush.msra.mxu0 0.0
  %380 = vmatpush.msra.mxu0 0.0
  %381 = vmatpush.msra.mxu0 0.0
  %382 = vmatpush.msra.mxu0 0.0
  %383 = vmatpush.msra.mxu0 0.0
  %384 = vmatpush.msra.mxu0 0.0
  %385 = vmatpush.msra.mxu0 0.0
  %386 = vmatpush.msra.mxu0 0.0
  %387 = vmatpush.msra.mxu0 %v114
  %388 = vmatpush.msra.mxu0 %v113
  %389 = vmatpush.msra.mxu0 %v112
  %390 = vmatpush.msra.mxu0 %v111
  %391 = vmatmul.f32.gmra.mxu0 %v373
  %v392 = vpop.f32.mrf.mxu0
  %v393 = vadd.f32 0.0, %v392
  %394 = vdwg.mxu0
  %v396 = vrot.slane %v393, 2
  %v398 = vadd.f32 %v145, %v396
  %v399 = vxor.u32 %v398, 2147483648
  %v400 = vmul.f32 %v399, 1.442695
  %v401 = vpow.pop %v400
  %v402 = vadd.f32 %v401, 1.0
  %v403 = vrcp.pop %v402
  %v404 = vmul.f32 %v402, %v403
  %v405 = vsub.f32 1.0, %v404
  %v406 = vmul.f32 %v403, %v405
  %v407 = vadd.f32 %v403, %v406
  %vm408 = vweird.f32 %v402
  %vm409 = vweird.f32 %v403
  %vm410 = vmor %vm408, %vm409
  %v411 = vsel %vm410, %v403, %v407
  %v412 = vand.u32 2147483647, %v402
  %vm413 = vcmp.eq.f32.partialorder %v412, 8.507059e+37
  %v414 = vand.u32 %v402, 2147483648
  %v415 = vor.u32 1.1754944e-38, %v414
  %v416 = vsel %vm413, %v415, %v411
  %v417 = vmul.f32 1.0, %v416
  %v418 = vtanh.pop %v398
  %v420 = vrot.slane %v357, 6
  %v422 = vmul.f32 %v417, %v420
  %424 = vrot.lane.b32.xlu0 %v418, 32
  %v425 = vpop.permute.xlu0 %424
  %v427 = vmul.f32 %v417, %v425
  %429 = vrot.lane.b32.xlu0 %v427, 32
  %v430 = vpop.permute.xlu0 %429
  %v432 = vadd.f32 %v422, %v430
  %v433 = vtanh.pop %v432
  %435 = vrot.lane.b32.xlu0 %v433, 32
  %v436 = vpop.permute.xlu0 %435
  %v438 = vmul.f32 %v417, %v436
  %440 = vrot.lane.b32.xlu0 %v438, 64
  %v441 = vpop.permute.xlu0 %440
  %vm443 = vcmask 261126
  %444 = vst.msk [vmem:[#allocation2] sm:$0xc0] %vm443, %v441
  %v445 = vrot.slane %v438, 6
  %446 = vrot.lane.b32.xlu0 %v445, 64
  %v447 = vpop.permute.xlu0 %446
  %v448 = vsel %vm104, %v447, 0
  %450 = vmatpush.msra.mxu0 0.0
  %451 = vmatpush.msra.mxu0 0.0
  %452 = vmatpush.msra.mxu0 0.0
  %453 = vmatpush.msra.mxu0 0.0
  %454 = vmatpush.msra.mxu0 0.0
  %455 = vmatpush.msra.mxu0 0.0
  %456 = vmatpush.msra.mxu0 0.0
  %457 = vmatpush.msra.mxu0 0.0
  %458 = vmatpush.msra.mxu0 0.0
  %459 = vmatpush.msra.mxu0 0.0
  %460 = vmatpush.msra.mxu0 0.0
  %461 = vmatpush.msra.mxu0 0.0
  %462 = vmatpush.msra.mxu0 %v114
  %463 = vmatpush.msra.mxu0 %v113
  %464 = vmatpush.msra.mxu0 %v112
  %465 = vmatpush.msra.mxu0 %v111
  %466 = vmatmul.f32.gmra.mxu0 %v448
  %v467 = vpop.f32.mrf.mxu0
  %v468 = vadd.f32 0.0, %v467
  %469 = vdwg.mxu0
  %v470 = vadd.f32 %v148, %v468
  %v471 = vxor.u32 %v470, 2147483648
  %v472 = vmul.f32 %v471, 1.442695
  %v473 = vpow.pop %v472
  %v474 = vadd.f32 %v473, 1.0
  %v475 = vrcp.pop %v474
  %v476 = vmul.f32 %v474, %v475
  %v477 = vsub.f32 1.0, %v476
  %v478 = vmul.f32 %v475, %v477
  %v479 = vadd.f32 %v475, %v478
  %vm480 = vweird.f32 %v474
  %vm481 = vweird.f32 %v475
  %vm482 = vmor %vm480, %vm481
  %v483 = vsel %vm482, %v475, %v479
  %v484 = vand.u32 2147483647, %v474
  %vm485 = vcmp.eq.f32.partialorder %v484, 8.507059e+37
  %v486 = vand.u32 %v474, 2147483648
  %v487 = vor.u32 1.1754944e-38, %v486
  %v488 = vsel %vm485, %v487, %v483
  %v489 = vmul.f32 1.0, %v488
  %v490 = vtanh.pop %v470
  %v492 = vrot.slane %v432, 6
  %v494 = vmul.f32 %v489, %v492
  %496 = vrot.lane.b32.xlu0 %v490, 32
  %v497 = vpop.permute.xlu0 %496
  %v499 = vmul.f32 %v489, %v497
  %501 = vrot.lane.b32.xlu0 %v499, 32
  %v502 = vpop.permute.xlu0 %501
  %v504 = vadd.f32 %v494, %v502
  %v505 = vtanh.pop %v504
  %507 = vrot.lane.b32.xlu0 %v505, 32
  %v508 = vpop.permute.xlu0 %507
  %v510 = vmul.f32 %v489, %v508
  %512 = vrot.lane.b32.xlu0 %v510, 64
  %v513 = vpop.permute.xlu0 %512
  %515 = vst.msk [vmem:[#allocation2 + $0x8] sm:$0x3] %vm221, %v513
  %v516 = vsel %vm104, %v513, 0
  %518 = vmatpush.msra.mxu0 0.0
  %519 = vmatpush.msra.mxu0 0.0
  %520 = vmatpush.msra.mxu0 0.0
  %521 = vmatpush.msra.mxu0 0.0
  %522 = vmatpush.msra.mxu0 0.0
  %523 = vmatpush.msra.mxu0 0.0
  %524 = vmatpush.msra.mxu0 0.0
  %525 = vmatpush.msra.mxu0 0.0
  %526 = vmatpush.msra.mxu0 0.0
  %527 = vmatpush.msra.mxu0 0.0
  %528 = vmatpush.msra.mxu0 0.0
  %529 = vmatpush.msra.mxu0 0.0
  %530 = vmatpush.msra.mxu0 %v114
  %531 = vmatpush.msra.mxu0 %v113
  %532 = vmatpush.msra.mxu0 %v112
  %533 = vmatpush.msra.mxu0 %v111
  %534 = vmatmul.f32.gmra.mxu0 %v516
  %v535 = vpop.f32.mrf.mxu0
  %v536 = vadd.f32 0.0, %v535
  %537 = vdwg.mxu0
  %v539 = vrot.slane %v536, 6
  %v541 = vadd.f32 %v148, %v539
  %v542 = vxor.u32 %v541, 2147483648
  %v543 = vmul.f32 %v542, 1.442695
  %v544 = vpow.pop %v543
  %v545 = vadd.f32 %v544, 1.0
  %v546 = vrcp.pop %v545
  %v547 = vmul.f32 %v545, %v546
  %v548 = vsub.f32 1.0, %v547
  %v549 = vmul.f32 %v546, %v548
  %v550 = vadd.f32 %v546, %v549
  %vm551 = vweird.f32 %v545
  %vm552 = vweird.f32 %v546
  %vm553 = vmor %vm551, %vm552
  %v554 = vsel %vm553, %v546, %v550
  %v555 = vand.u32 2147483647, %v545
  %vm556 = vcmp.eq.f32.partialorder %v555, 8.507059e+37
  %v557 = vand.u32 %v545, 2147483648
  %v558 = vor.u32 1.1754944e-38, %v557
  %v559 = vsel %vm556, %v558, %v554
  %v560 = vmul.f32 1.0, %v559
  %v561 = vtanh.pop %v541
  %v563 = vrot.slane %v504, 6
  %v565 = vmul.f32 %v560, %v563
  %567 = vrot.lane.b32.xlu0 %v561, 32
  %v568 = vpop.permute.xlu0 %567
  %v570 = vmul.f32 %v560, %v568
  %572 = vrot.lane.b32.xlu0 %v570, 32
  %v573 = vpop.permute.xlu0 %572
  %v575 = vadd.f32 %v565, %v573
  %v576 = vtanh.pop %v575
  %578 = vrot.lane.b32.xlu0 %v576, 32
  %v579 = vpop.permute.xlu0 %578
  %v581 = vmul.f32 %v560, %v579
  %583 = vrot.lane.b32.xlu0 %v581, 64
  %v584 = vpop.permute.xlu0 %583
  %586 = vst.msk [vmem:[#allocation2 + $0x8] sm:$0xc] %vm293, %v584
  %v587 = vrot.slane %v581, 2
  %588 = vrot.lane.b32.xlu0 %v587, 64
  %v589 = vpop.permute.xlu0 %588
  %v590 = vsel %vm104, %v589, 0
  %592 = vmatpush.msra.mxu0 0.0
  %593 = vmatpush.msra.mxu0 0.0
  %594 = vmatpush.msra.mxu0 0.0
  %595 = vmatpush.msra.mxu0 0.0
  %596 = vmatpush.msra.mxu0 0.0
  %597 = vmatpush.msra.mxu0 0.0
  %598 = vmatpush.msra.mxu0 0.0
  %599 = vmatpush.msra.mxu0 0.0
  %600 = vmatpush.msra.mxu0 0.0
  %601 = vmatpush.msra.mxu0 0.0
  %602 = vmatpush.msra.mxu0 0.0
  %603 = vmatpush.msra.mxu0 0.0
  %604 = vmatpush.msra.mxu0 %v114
  %605 = vmatpush.msra.mxu0 %v113
  %606 = vmatpush.msra.mxu0 %v112
  %607 = vmatpush.msra.mxu0 %v111
  %608 = vmatmul.f32.gmra.mxu0 %v590
  %v609 = vpop.f32.mrf.mxu0
  %v610 = vadd.f32 0.0, %v609
  %611 = vdwg.mxu0
  %v613 = vrot.slane %v610, 4
  %v615 = vadd.f32 %v148, %v613
  %v616 = vxor.u32 %v615, 2147483648
  %v617 = vmul.f32 %v616, 1.442695
  %v618 = vpow.pop %v617
  %v619 = vadd.f32 %v618, 1.0
  %v620 = vrcp.pop %v619
  %v621 = vmul.f32 %v619, %v620
  %v622 = vsub.f32 1.0, %v621
  %v623 = vmul.f32 %v620, %v622
  %v624 = vadd.f32 %v620, %v623
  %vm625 = vweird.f32 %v619
  %vm626 = vweird.f32 %v620
  %vm627 = vmor %vm625, %vm626
  %v628 = vsel %vm627, %v620, %v624
  %v629 = vand.u32 2147483647, %v619
  %vm630 = vcmp.eq.f32.partialorder %v629, 8.507059e+37
  %v631 = vand.u32 %v619, 2147483648
  %v632 = vor.u32 1.1754944e-38, %v631
  %v633 = vsel %vm630, %v632, %v628
  %v634 = vmul.f32 1.0, %v633
  %v635 = vtanh.pop %v615
  %v637 = vrot.slane %v575, 6
  %v639 = vmul.f32 %v634, %v637
  %641 = vrot.lane.b32.xlu0 %v635, 32
  %v642 = vpop.permute.xlu0 %641
  %v644 = vmul.f32 %v634, %v642
  %646 = vrot.lane.b32.xlu0 %v644, 32
  %v647 = vpop.permute.xlu0 %646
  %v649 = vadd.f32 %v639, %v647
  %v650 = vtanh.pop %v649
  %652 = vrot.lane.b32.xlu0 %v650, 32
  %v653 = vpop.permute.xlu0 %652
  %v655 = vmul.f32 %v634, %v653
  %657 = vrot.lane.b32.xlu0 %v655, 64
  %v658 = vpop.permute.xlu0 %657
  %660 = vst.msk [vmem:[#allocation2 + $0x8] sm:$0x30] %vm368, %v658
  %v661 = vrot.slane %v655, 4
  %662 = vrot.lane.b32.xlu0 %v661, 64
  %v663 = vpop.permute.xlu0 %662
  %v664 = vsel %vm104, %v663, 0
  %666 = vmatpush.msra.mxu0 0.0
  %667 = vmatpush.msra.mxu0 0.0
  %668 = vmatpush.msra.mxu0 0.0
  %669 = vmatpush.msra.mxu0 0.0
  %670 = vmatpush.msra.mxu0 0.0
  %671 = vmatpush.msra.mxu0 0.0
  %672 = vmatpush.msra.mxu0 0.0
  %673 = vmatpush.msra.mxu0 0.0
  %674 = vmatpush.msra.mxu0 0.0
  %675 = vmatpush.msra.mxu0 0.0
  %676 = vmatpush.msra.mxu0 0.0
  %677 = vmatpush.msra.mxu0 0.0
  %678 = vmatpush.msra.mxu0 %v114
  %679 = vmatpush.msra.mxu0 %v113
  %680 = vmatpush.msra.mxu0 %v112
  %681 = vmatpush.msra.mxu0 %v111
  %682 = vmatmul.f32.gmra.mxu0 %v664
  %v683 = vpop.f32.mrf.mxu0
  %v684 = vadd.f32 0.0, %v683
  %685 = vdwg.mxu0
  %v687 = vrot.slane %v684, 2
  %v689 = vadd.f32 %v148, %v687
  %v690 = vxor.u32 %v689, 2147483648
  %v691 = vmul.f32 %v690, 1.442695
  %v692 = vpow.pop %v691
  %v693 = vadd.f32 %v692, 1.0
  %v694 = vrcp.pop %v693
  %v695 = vmul.f32 %v693, %v694
  %v696 = vsub.f32 1.0, %v695
  %v697 = vmul.f32 %v694, %v696
  %v698 = vadd.f32 %v694, %v697
  %vm699 = vweird.f32 %v693
  %vm700 = vweird.f32 %v694
  %vm701 = vmor %vm699, %vm700
  %v702 = vsel %vm701, %v694, %v698
  %v703 = vand.u32 2147483647, %v693
  %vm704 = vcmp.eq.f32.partialorder %v703, 8.507059e+37
  %v705 = vand.u32 %v693, 2147483648
  %v706 = vor.u32 1.1754944e-38, %v705
  %v707 = vsel %vm704, %v706, %v702
  %v708 = vmul.f32 1.0, %v707
  %v709 = vtanh.pop %v689
  %v711 = vrot.slane %v649, 6
  %v713 = vmul.f32 %v708, %v711
  %715 = vrot.lane.b32.xlu0 %v709, 32
  %v716 = vpop.permute.xlu0 %715
  %v718 = vmul.f32 %v708, %v716
  %720 = vrot.lane.b32.xlu0 %v718, 32
  %v721 = vpop.permute.xlu0 %720
  %v723 = vadd.f32 %v713, %v721
  %v724 = vtanh.pop %v723
  %726 = vrot.lane.b32.xlu0 %v724, 32
  %v727 = vpop.permute.xlu0 %726
  %v729 = vmul.f32 %v708, %v727
  %731 = vrot.lane.b32.xlu0 %v729, 64
  %v732 = vpop.permute.xlu0 %731
  %734 = vst.msk [vmem:[#allocation2 + $0x8] sm:$0xc0] %vm443, %v732
  %v735 = vld [vmem:[%s7] sm:$0xff]
  %v736 = vld [vmem:[%s7 + $0x8] sm:$0xff]
  %v737 = vld [vmem:[%s7 + $0x10] sm:$0xff]
  %v738 = vld [vmem:[%s7 + $0x18] sm:$0xff]
  %v739 = vld [vmem:[%s8] sm:$0xff]
  %v740 = vld [vmem:[%s8 + $0x8] sm:$0xff]
  %v741 = vld [vmem:[%s8 + $0x10] sm:$0xff]
  %v742 = vld [vmem:[%s8 + $0x18] sm:$0xff]
  %v743 = vld [vmem:[%s9] sm:$0x1]
  %v744 = vld [vmem:[#allocation2] sm:$0xff]
  %v745 = vld [vmem:[#allocation2 + $0x8] sm:$0xff]
  %v747 = vperm.slane %v743, 0
  %v750 = vsel %vm104, %v744, 0
  %v753 = vsel %vm104, %v745, 0
  %755 = vmatpush.msra.mxu0 0.0
  %756 = vmatpush.msra.mxu0 0.0
  %757 = vmatpush.msra.mxu0 0.0
  %758 = vmatpush.msra.mxu0 0.0
  %759 = vmatpush.msra.mxu0 0.0
  %760 = vmatpush.msra.mxu0 0.0
  %761 = vmatpush.msra.mxu0 0.0
  %762 = vmatpush.msra.mxu0 0.0
  %763 = vmatpush.msra.mxu0 0.0
  %764 = vmatpush.msra.mxu0 0.0
  %765 = vmatpush.msra.mxu0 0.0
  %766 = vmatpush.msra.mxu0 0.0
  %767 = vmatpush.msra.mxu0 %v738
  %768 = vmatpush.msra.mxu0 %v737
  %769 = vmatpush.msra.mxu0 %v736
  %770 = vmatpush.msra.mxu0 %v735
  %771 = vmatmul.f32.gmra.mxu0 %v750
  %v772 = vpop.f32.mrf.mxu0
  %v773 = vadd.f32 %v747, %v772
  %774 = vmatmul.f32.gmra.mxu0 %v753
  %v775 = vpop.f32.mrf.mxu0
  %v776 = vadd.f32 %v747, %v775
  %777 = vdwg.mxu0
  %s778 = scalar_lea.vmem %s2, 2
  %v779 = vld [vmem:[%s778] sm:$0x3]
  %s780 = scalar_lea.vmem %s3, 2
  %v781 = vld [vmem:[%s780] sm:$0x3]
  %v783 = vsel %vm104, %v779, 0
  %785 = vmatpush.msra.mxu0 0.0
  %786 = vmatpush.msra.mxu0 0.0
  %787 = vmatpush.msra.mxu0 0.0
  %788 = vmatpush.msra.mxu0 0.0
  %789 = vmatpush.msra.mxu0 0.0
  %790 = vmatpush.msra.mxu0 0.0
  %791 = vmatpush.msra.mxu0 0.0
  %792 = vmatpush.msra.mxu0 0.0
  %793 = vmatpush.msra.mxu0 0.0
  %794 = vmatpush.msra.mxu0 0.0
  %795 = vmatpush.msra.mxu0 0.0
  %796 = vmatpush.msra.mxu0 0.0
  %797 = vmatpush.msra.mxu0 %v742
  %798 = vmatpush.msra.mxu0 %v741
  %799 = vmatpush.msra.mxu0 %v740
  %800 = vmatpush.msra.mxu0 %v739
  %801 = vmatmul.f32.gmra.mxu0 %v783
  %v802 = vpop.f32.mrf.mxu0
  %v803 = vadd.f32 0.0, %v802
  %804 = vdwg.mxu0
  %v805 = vadd.f32 %v773, %v803
  %v806 = vxor.u32 %v805, 2147483648
  %v807 = vmul.f32 %v806, 1.442695
  %v808 = vpow.pop %v807
  %v809 = vadd.f32 %v808, 1.0
  %v810 = vrcp.pop %v809
  %v811 = vmul.f32 %v809, %v810
  %v812 = vsub.f32 1.0, %v811
  %v813 = vmul.f32 %v810, %v812
  %v814 = vadd.f32 %v810, %v813
  %vm815 = vweird.f32 %v809
  %vm816 = vweird.f32 %v810
  %vm817 = vmor %vm815, %vm816
  %v818 = vsel %vm817, %v810, %v814
  %v819 = vand.u32 2147483647, %v809
  %vm820 = vcmp.eq.f32.partialorder %v819, 8.507059e+37
  %v821 = vand.u32 %v809, 2147483648
  %v822 = vor.u32 1.1754944e-38, %v821
  %v823 = vsel %vm820, %v822, %v818
  %v824 = vmul.f32 1.0, %v823
  %v825 = vtanh.pop %v805
  %827 = vrot.lane.b32.xlu0 %v781, 32
  %v828 = vpop.permute.xlu0 %827
  %v830 = vmul.f32 %v824, %v828
  %832 = vrot.lane.b32.xlu0 %v825, 32
  %v833 = vpop.permute.xlu0 %832
  %v835 = vmul.f32 %v824, %v833
  %837 = vrot.lane.b32.xlu0 %v835, 32
  %v838 = vpop.permute.xlu0 %837
  %v840 = vadd.f32 %v830, %v838
  %v841 = vtanh.pop %v840
  %843 = vrot.lane.b32.xlu0 %v841, 32
  %v844 = vpop.permute.xlu0 %843
  %v846 = vmul.f32 %v824, %v844
  %848 = vrot.lane.b32.xlu0 %v846, 64
  %v849 = vpop.permute.xlu0 %848
  %v850 = vsel %vm104, %v849, 0
  %852 = vmatpush.msra.mxu0 0.0
  %853 = vmatpush.msra.mxu0 0.0
  %854 = vmatpush.msra.mxu0 0.0
  %855 = vmatpush.msra.mxu0 0.0
  %856 = vmatpush.msra.mxu0 0.0
  %857 = vmatpush.msra.mxu0 0.0
  %858 = vmatpush.msra.mxu0 0.0
  %859 = vmatpush.msra.mxu0 0.0
  %860 = vmatpush.msra.mxu0 0.0
  %861 = vmatpush.msra.mxu0 0.0
  %862 = vmatpush.msra.mxu0 0.0
  %863 = vmatpush.msra.mxu0 0.0
  %864 = vmatpush.msra.mxu0 %v742
  %865 = vmatpush.msra.mxu0 %v741
  %866 = vmatpush.msra.mxu0 %v740
  %867 = vmatpush.msra.mxu0 %v739
  %868 = vmatmul.f32.gmra.mxu0 %v850
  %v869 = vpop.f32.mrf.mxu0
  %v870 = vadd.f32 0.0, %v869
  %871 = vdwg.mxu0
  %v873 = vrot.slane %v870, 6
  %v875 = vadd.f32 %v773, %v873
  %v876 = vxor.u32 %v875, 2147483648
  %v877 = vmul.f32 %v876, 1.442695
  %v878 = vpow.pop %v877
  %v879 = vadd.f32 %v878, 1.0
  %v880 = vrcp.pop %v879
  %v881 = vmul.f32 %v879, %v880
  %v882 = vsub.f32 1.0, %v881
  %v883 = vmul.f32 %v880, %v882
  %v884 = vadd.f32 %v880, %v883
  %vm885 = vweird.f32 %v879
  %vm886 = vweird.f32 %v880
  %vm887 = vmor %vm885, %vm886
  %v888 = vsel %vm887, %v880, %v884
  %v889 = vand.u32 2147483647, %v879
  %vm890 = vcmp.eq.f32.partialorder %v889, 8.507059e+37
  %v891 = vand.u32 %v879, 2147483648
  %v892 = vor.u32 1.1754944e-38, %v891
  %v893 = vsel %vm890, %v892, %v888
  %v894 = vmul.f32 1.0, %v893
  %v895 = vtanh.pop %v875
  %v897 = vrot.slane %v840, 6
  %v899 = vmul.f32 %v894, %v897
  %901 = vrot.lane.b32.xlu0 %v895, 32
  %v902 = vpop.permute.xlu0 %901
  %v904 = vmul.f32 %v894, %v902
  %906 = vrot.lane.b32.xlu0 %v904, 32
  %v907 = vpop.permute.xlu0 %906
  %v909 = vadd.f32 %v899, %v907
  %v910 = vtanh.pop %v909
  %912 = vrot.lane.b32.xlu0 %v910, 32
  %v913 = vpop.permute.xlu0 %912
  %v915 = vmul.f32 %v894, %v913
  %v917 = vrot.slane %v915, 2
  %918 = vrot.lane.b32.xlu0 %v917, 64
  %v919 = vpop.permute.xlu0 %918
  %v920 = vsel %vm104, %v919, 0
  %922 = vmatpush.msra.mxu0 0.0
  %923 = vmatpush.msra.mxu0 0.0
  %924 = vmatpush.msra.mxu0 0.0
  %925 = vmatpush.msra.mxu0 0.0
  %926 = vmatpush.msra.mxu0 0.0
  %927 = vmatpush.msra.mxu0 0.0
  %928 = vmatpush.msra.mxu0 0.0
  %929 = vmatpush.msra.mxu0 0.0
  %930 = vmatpush.msra.mxu0 0.0
  %931 = vmatpush.msra.mxu0 0.0
  %932 = vmatpush.msra.mxu0 0.0
  %933 = vmatpush.msra.mxu0 0.0
  %934 = vmatpush.msra.mxu0 %v742
  %935 = vmatpush.msra.mxu0 %v741
  %936 = vmatpush.msra.mxu0 %v740
  %937 = vmatpush.msra.mxu0 %v739
  %938 = vmatmul.f32.gmra.mxu0 %v920
  %v939 = vpop.f32.mrf.mxu0
  %v940 = vadd.f32 0.0, %v939
  %941 = vdwg.mxu0
  %v943 = vrot.slane %v940, 4
  %v945 = vadd.f32 %v773, %v943
  %v946 = vxor.u32 %v945, 2147483648
  %v947 = vmul.f32 %v946, 1.442695
  %v948 = vpow.pop %v947
  %v949 = vadd.f32 %v948, 1.0
  %v950 = vrcp.pop %v949
  %v951 = vmul.f32 %v949, %v950
  %v952 = vsub.f32 1.0, %v951
  %v953 = vmul.f32 %v950, %v952
  %v954 = vadd.f32 %v950, %v953
  %vm955 = vweird.f32 %v949
  %vm956 = vweird.f32 %v950
  %vm957 = vmor %vm955, %vm956
  %v958 = vsel %vm957, %v950, %v954
  %v959 = vand.u32 2147483647, %v949
  %vm960 = vcmp.eq.f32.partialorder %v959, 8.507059e+37
  %v961 = vand.u32 %v949, 2147483648
  %v962 = vor.u32 1.1754944e-38, %v961
  %v963 = vsel %vm960, %v962, %v958
  %v964 = vmul.f32 1.0, %v963
  %v965 = vtanh.pop %v945
  %v967 = vrot.slane %v909, 6
  %v969 = vmul.f32 %v964, %v967
  %971 = vrot.lane.b32.xlu0 %v965, 32
  %v972 = vpop.permute.xlu0 %971
  %v974 = vmul.f32 %v964, %v972
  %976 = vrot.lane.b32.xlu0 %v974, 32
  %v977 = vpop.permute.xlu0 %976
  %v979 = vadd.f32 %v969, %v977
  %v980 = vtanh.pop %v979
  %982 = vrot.lane.b32.xlu0 %v980, 32
  %v983 = vpop.permute.xlu0 %982
  %v985 = vmul.f32 %v964, %v983
  %v987 = vrot.slane %v985, 4
  %988 = vrot.lane.b32.xlu0 %v987, 64
  %v989 = vpop.permute.xlu0 %988
  %v990 = vsel %vm104, %v989, 0
  %992 = vmatpush.msra.mxu0 0.0
  %993 = vmatpush.msra.mxu0 0.0
  %994 = vmatpush.msra.mxu0 0.0
  %995 = vmatpush.msra.mxu0 0.0
  %996 = vmatpush.msra.mxu0 0.0
  %997 = vmatpush.msra.mxu0 0.0
  %998 = vmatpush.msra.mxu0 0.0
  %999 = vmatpush.msra.mxu0 0.0
  %1000 = vmatpush.msra.mxu0 0.0
  %1001 = vmatpush.msra.mxu0 0.0
  %1002 = vmatpush.msra.mxu0 0.0
  %1003 = vmatpush.msra.mxu0 0.0
  %1004 = vmatpush.msra.mxu0 %v742
  %1005 = vmatpush.msra.mxu0 %v741
  %1006 = vmatpush.msra.mxu0 %v740
  %1007 = vmatpush.msra.mxu0 %v739
  %1008 = vmatmul.f32.gmra.mxu0 %v990
  %v1009 = vpop.f32.mrf.mxu0
  %v1010 = vadd.f32 0.0, %v1009
  %1011 = vdwg.mxu0
  %v1013 = vrot.slane %v1010, 2
  %v1015 = vadd.f32 %v773, %v1013
  %v1016 = vxor.u32 %v1015, 2147483648
  %v1017 = vmul.f32 %v1016, 1.442695
  %v1018 = vpow.pop %v1017
  %v1019 = vadd.f32 %v1018, 1.0
  %v1020 = vrcp.pop %v1019
  %v1021 = vmul.f32 %v1019, %v1020
  %v1022 = vsub.f32 1.0, %v1021
  %v1023 = vmul.f32 %v1020, %v1022
  %v1024 = vadd.f32 %v1020, %v1023
  %vm1025 = vweird.f32 %v1019
  %vm1026 = vweird.f32 %v1020
  %vm1027 = vmor %vm1025, %vm1026
  %v1028 = vsel %vm1027, %v1020, %v1024
  %v1029 = vand.u32 2147483647, %v1019
  %vm1030 = vcmp.eq.f32.partialorder %v1029, 8.507059e+37
  %v1031 = vand.u32 %v1019, 2147483648
  %v1032 = vor.u32 1.1754944e-38, %v1031
  %v1033 = vsel %vm1030, %v1032, %v1028
  %v1034 = vmul.f32 1.0, %v1033
  %v1035 = vtanh.pop %v1015
  %v1037 = vrot.slane %v979, 6
  %v1039 = vmul.f32 %v1034, %v1037
  %1041 = vrot.lane.b32.xlu0 %v1035, 32
  %v1042 = vpop.permute.xlu0 %1041
  %v1044 = vmul.f32 %v1034, %v1042
  %1046 = vrot.lane.b32.xlu0 %v1044, 32
  %v1047 = vpop.permute.xlu0 %1046
  %v1049 = vadd.f32 %v1039, %v1047
  %v1050 = vtanh.pop %v1049
  %1052 = vrot.lane.b32.xlu0 %v1050, 32
  %v1053 = vpop.permute.xlu0 %1052
  %v1055 = vmul.f32 %v1034, %v1053
  %v1057 = vrot.slane %v1055, 6
  %1058 = vrot.lane.b32.xlu0 %v1057, 64
  %v1059 = vpop.permute.xlu0 %1058
  %v1060 = vsel %vm104, %v1059, 0
  %1062 = vmatpush.msra.mxu0 0.0
  %1063 = vmatpush.msra.mxu0 0.0
  %1064 = vmatpush.msra.mxu0 0.0
  %1065 = vmatpush.msra.mxu0 0.0
  %1066 = vmatpush.msra.mxu0 0.0
  %1067 = vmatpush.msra.mxu0 0.0
  %1068 = vmatpush.msra.mxu0 0.0
  %1069 = vmatpush.msra.mxu0 0.0
  %1070 = vmatpush.msra.mxu0 0.0
  %1071 = vmatpush.msra.mxu0 0.0
  %1072 = vmatpush.msra.mxu0 0.0
  %1073 = vmatpush.msra.mxu0 0.0
  %1074 = vmatpush.msra.mxu0 %v742
  %1075 = vmatpush.msra.mxu0 %v741
  %1076 = vmatpush.msra.mxu0 %v740
  %1077 = vmatpush.msra.mxu0 %v739
  %1078 = vmatmul.f32.gmra.mxu0 %v1060
  %v1079 = vpop.f32.mrf.mxu0
  %v1080 = vadd.f32 0.0, %v1079
  %1081 = vdwg.mxu0
  %v1082 = vadd.f32 %v776, %v1080
  %v1083 = vxor.u32 %v1082, 2147483648
  %v1084 = vmul.f32 %v1083, 1.442695
  %v1085 = vpow.pop %v1084
  %v1086 = vadd.f32 %v1085, 1.0
  %v1087 = vrcp.pop %v1086
  %v1088 = vmul.f32 %v1086, %v1087
  %v1089 = vsub.f32 1.0, %v1088
  %v1090 = vmul.f32 %v1087, %v1089
  %v1091 = vadd.f32 %v1087, %v1090
  %vm1092 = vweird.f32 %v1086
  %vm1093 = vweird.f32 %v1087
  %vm1094 = vmor %vm1092, %vm1093
  %v1095 = vsel %vm1094, %v1087, %v1091
  %v1096 = vand.u32 2147483647, %v1086
  %vm1097 = vcmp.eq.f32.partialorder %v1096, 8.507059e+37
  %v1098 = vand.u32 %v1086, 2147483648
  %v1099 = vor.u32 1.1754944e-38, %v1098
  %v1100 = vsel %vm1097, %v1099, %v1095
  %v1101 = vmul.f32 1.0, %v1100
  %v1102 = vtanh.pop %v1082
  %v1104 = vrot.slane %v1049, 6
  %v1106 = vmul.f32 %v1101, %v1104
  %1108 = vrot.lane.b32.xlu0 %v1102, 32
  %v1109 = vpop.permute.xlu0 %1108
  %v1111 = vmul.f32 %v1101, %v1109
  %1113 = vrot.lane.b32.xlu0 %v1111, 32
  %v1114 = vpop.permute.xlu0 %1113
  %v1116 = vadd.f32 %v1106, %v1114
  %v1117 = vtanh.pop %v1116
  %1119 = vrot.lane.b32.xlu0 %v1117, 32
  %v1120 = vpop.permute.xlu0 %1119
  %v1122 = vmul.f32 %v1101, %v1120
  %1124 = vrot.lane.b32.xlu0 %v1122, 64
  %v1125 = vpop.permute.xlu0 %1124
  %v1126 = vsel %vm104, %v1125, 0
  %1128 = vmatpush.msra.mxu0 0.0
  %1129 = vmatpush.msra.mxu0 0.0
  %1130 = vmatpush.msra.mxu0 0.0
  %1131 = vmatpush.msra.mxu0 0.0
  %1132 = vmatpush.msra.mxu0 0.0
  %1133 = vmatpush.msra.mxu0 0.0
  %1134 = vmatpush.msra.mxu0 0.0
  %1135 = vmatpush.msra.mxu0 0.0
  %1136 = vmatpush.msra.mxu0 0.0
  %1137 = vmatpush.msra.mxu0 0.0
  %1138 = vmatpush.msra.mxu0 0.0
  %1139 = vmatpush.msra.mxu0 0.0
  %1140 = vmatpush.msra.mxu0 %v742
  %1141 = vmatpush.msra.mxu0 %v741
  %1142 = vmatpush.msra.mxu0 %v740
  %1143 = vmatpush.msra.mxu0 %v739
  %1144 = vmatmul.f32.gmra.mxu0 %v1126
  %v1145 = vpop.f32.mrf.mxu0
  %v1146 = vadd.f32 0.0, %v1145
  %1147 = vdwg.mxu0
  %v1149 = vrot.slane %v1146, 6
  %v1151 = vadd.f32 %v776, %v1149
  %v1152 = vxor.u32 %v1151, 2147483648
  %v1153 = vmul.f32 %v1152, 1.442695
  %v1154 = vpow.pop %v1153
  %v1155 = vadd.f32 %v1154, 1.0
  %v1156 = vrcp.pop %v1155
  %v1157 = vmul.f32 %v1155, %v1156
  %v1158 = vsub.f32 1.0, %v1157
  %v1159 = vmul.f32 %v1156, %v1158
  %v1160 = vadd.f32 %v1156, %v1159
  %vm1161 = vweird.f32 %v1155
  %vm1162 = vweird.f32 %v1156
  %vm1163 = vmor %vm1161, %vm1162
  %v1164 = vsel %vm1163, %v1156, %v1160
  %v1165 = vand.u32 2147483647, %v1155
  %vm1166 = vcmp.eq.f32.partialorder %v1165, 8.507059e+37
  %v1167 = vand.u32 %v1155, 2147483648
  %v1168 = vor.u32 1.1754944e-38, %v1167
  %v1169 = vsel %vm1166, %v1168, %v1164
  %v1170 = vmul.f32 1.0, %v1169
  %v1171 = vtanh.pop %v1151
  %v1173 = vrot.slane %v1116, 6
  %v1175 = vmul.f32 %v1170, %v1173
  %1177 = vrot.lane.b32.xlu0 %v1171, 32
  %v1178 = vpop.permute.xlu0 %1177
  %v1180 = vmul.f32 %v1170, %v1178
  %1182 = vrot.lane.b32.xlu0 %v1180, 32
  %v1183 = vpop.permute.xlu0 %1182
  %v1185 = vadd.f32 %v1175, %v1183
  %v1186 = vtanh.pop %v1185
  %1188 = vrot.lane.b32.xlu0 %v1186, 32
  %v1189 = vpop.permute.xlu0 %1188
  %v1191 = vmul.f32 %v1170, %v1189
  %v1193 = vrot.slane %v1191, 2
  %1194 = vrot.lane.b32.xlu0 %v1193, 64
  %v1195 = vpop.permute.xlu0 %1194
  %v1196 = vsel %vm104, %v1195, 0
  %1198 = vmatpush.msra.mxu0 0.0
  %1199 = vmatpush.msra.mxu0 0.0
  %1200 = vmatpush.msra.mxu0 0.0
  %1201 = vmatpush.msra.mxu0 0.0
  %1202 = vmatpush.msra.mxu0 0.0
  %1203 = vmatpush.msra.mxu0 0.0
  %1204 = vmatpush.msra.mxu0 0.0
  %1205 = vmatpush.msra.mxu0 0.0
  %1206 = vmatpush.msra.mxu0 0.0
  %1207 = vmatpush.msra.mxu0 0.0
  %1208 = vmatpush.msra.mxu0 0.0
  %1209 = vmatpush.msra.mxu0 0.0
  %1210 = vmatpush.msra.mxu0 %v742
  %1211 = vmatpush.msra.mxu0 %v741
  %1212 = vmatpush.msra.mxu0 %v740
  %1213 = vmatpush.msra.mxu0 %v739
  %1214 = vmatmul.f32.gmra.mxu0 %v1196
  %v1215 = vpop.f32.mrf.mxu0
  %v1216 = vadd.f32 0.0, %v1215
  %1217 = vdwg.mxu0
  %v1219 = vrot.slane %v1216, 4
  %v1221 = vadd.f32 %v776, %v1219
  %v1222 = vxor.u32 %v1221, 2147483648
  %v1223 = vmul.f32 %v1222, 1.442695
  %v1224 = vpow.pop %v1223
  %v1225 = vadd.f32 %v1224, 1.0
  %v1226 = vrcp.pop %v1225
  %v1227 = vmul.f32 %v1225, %v1226
  %v1228 = vsub.f32 1.0, %v1227
  %v1229 = vmul.f32 %v1226, %v1228
  %v1230 = vadd.f32 %v1226, %v1229
  %vm1231 = vweird.f32 %v1225
  %vm1232 = vweird.f32 %v1226
  %vm1233 = vmor %vm1231, %vm1232
  %v1234 = vsel %vm1233, %v1226, %v1230
  %v1235 = vand.u32 2147483647, %v1225
  %vm1236 = vcmp.eq.f32.partialorder %v1235, 8.507059e+37
  %v1237 = vand.u32 %v1225, 2147483648
  %v1238 = vor.u32 1.1754944e-38, %v1237
  %v1239 = vsel %vm1236, %v1238, %v1234
  %v1240 = vmul.f32 1.0, %v1239
  %v1241 = vtanh.pop %v1221
  %v1243 = vrot.slane %v1185, 6
  %v1245 = vmul.f32 %v1240, %v1243
  %1247 = vrot.lane.b32.xlu0 %v1241, 32
  %v1248 = vpop.permute.xlu0 %1247
  %v1250 = vmul.f32 %v1240, %v1248
  %1252 = vrot.lane.b32.xlu0 %v1250, 32
  %v1253 = vpop.permute.xlu0 %1252
  %v1255 = vadd.f32 %v1245, %v1253
  %v1256 = vtanh.pop %v1255
  %1258 = vrot.lane.b32.xlu0 %v1256, 32
  %v1259 = vpop.permute.xlu0 %1258
  %v1261 = vmul.f32 %v1240, %v1259
  %v1263 = vrot.slane %v1261, 4
  %1264 = vrot.lane.b32.xlu0 %v1263, 64
  %v1265 = vpop.permute.xlu0 %1264
  %v1266 = vsel %vm104, %v1265, 0
  %1268 = vmatpush.msra.mxu0 0.0
  %1269 = vmatpush.msra.mxu0 0.0
  %1270 = vmatpush.msra.mxu0 0.0
  %1271 = vmatpush.msra.mxu0 0.0
  %1272 = vmatpush.msra.mxu0 0.0
  %1273 = vmatpush.msra.mxu0 0.0
  %1274 = vmatpush.msra.mxu0 0.0
  %1275 = vmatpush.msra.mxu0 0.0
  %1276 = vmatpush.msra.mxu0 0.0
  %1277 = vmatpush.msra.mxu0 0.0
  %1278 = vmatpush.msra.mxu0 0.0
  %1279 = vmatpush.msra.mxu0 0.0
  %1280 = vmatpush.msra.mxu0 %v742
  %1281 = vmatpush.msra.mxu0 %v741
  %1282 = vmatpush.msra.mxu0 %v740
  %1283 = vmatpush.msra.mxu0 %v739
  %1284 = vmatmul.f32.gmra.mxu0 %v1266
  %v1285 = vpop.f32.mrf.mxu0
  %v1286 = vadd.f32 0.0, %v1285
  %1287 = vdwg.mxu0
  %v1289 = vrot.slane %v1286, 2
  %v1291 = vadd.f32 %v776, %v1289
  %v1292 = vxor.u32 %v1291, 2147483648
  %v1293 = vmul.f32 %v1292, 1.442695
  %v1294 = vpow.pop %v1293
  %v1295 = vadd.f32 %v1294, 1.0
  %v1296 = vrcp.pop %v1295
  %v1297 = vmul.f32 %v1295, %v1296
  %v1298 = vsub.f32 1.0, %v1297
  %v1299 = vmul.f32 %v1296, %v1298
  %v1300 = vadd.f32 %v1296, %v1299
  %vm1301 = vweird.f32 %v1295
  %vm1302 = vweird.f32 %v1296
  %vm1303 = vmor %vm1301, %vm1302
  %v1304 = vsel %vm1303, %v1296, %v1300
  %v1305 = vand.u32 2147483647, %v1295
  %vm1306 = vcmp.eq.f32.partialorder %v1305, 8.507059e+37
  %v1307 = vand.u32 %v1295, 2147483648
  %v1308 = vor.u32 1.1754944e-38, %v1307
  %v1309 = vsel %vm1306, %v1308, %v1304
  %v1310 = vmul.f32 1.0, %v1309
  %v1311 = vtanh.pop %v1291
  %v1313 = vrot.slane %v1255, 6
  %v1315 = vmul.f32 %v1310, %v1313
  %1317 = vrot.lane.b32.xlu0 %v1311, 32
  %v1318 = vpop.permute.xlu0 %1317
  %v1320 = vmul.f32 %v1310, %v1318
  %1322 = vrot.lane.b32.xlu0 %v1320, 32
  %v1323 = vpop.permute.xlu0 %1322
  %v1325 = vadd.f32 %v1315, %v1323
  %v1326 = vtanh.pop %v1325
  %1328 = vrot.lane.b32.xlu0 %v1326, 32
  %v1329 = vpop.permute.xlu0 %1328
  %v1331 = vmul.f32 %v1310, %v1329
  %v1332 = vld [vmem:[%s10] sm:$0xff]
  %v1333 = vld [vmem:[%s10 + $0x8] sm:$0xff]
  %v1334 = vld [vmem:[%s10 + $0x10] sm:$0xff]
  %v1335 = vld [vmem:[%s10 + $0x18] sm:$0xff]
  %v1336 = vld [vmem:[%s11] sm:$0x1]
  %v1338 = vperm.slane %v1336, 0
  %v1341 = vrot.slane %v1331, 6
  %1342 = vrot.lane.b32.xlu0 %v1341, 64
  %v1343 = vpop.permute.xlu0 %1342
  %v1344 = vsel %vm104, %v1343, 0
  %1346 = vmatpush.msra.mxu0 0.0
  %1347 = vmatpush.msra.mxu0 0.0
  %1348 = vmatpush.msra.mxu0 0.0
  %1349 = vmatpush.msra.mxu0 0.0
  %1350 = vmatpush.msra.mxu0 0.0
  %1351 = vmatpush.msra.mxu0 0.0
  %1352 = vmatpush.msra.mxu0 0.0
  %1353 = vmatpush.msra.mxu0 0.0
  %1354 = vmatpush.msra.mxu0 0.0
  %1355 = vmatpush.msra.mxu0 0.0
  %1356 = vmatpush.msra.mxu0 0.0
  %1357 = vmatpush.msra.mxu0 0.0
  %1358 = vmatpush.msra.mxu0 %v1335
  %1359 = vmatpush.msra.mxu0 %v1334
  %1360 = vmatpush.msra.mxu0 %v1333
  %1361 = vmatpush.msra.mxu0 %v1332
  %1362 = vmatmul.f32.gmra.mxu0 %v1344
  %v1363 = vpop.f32.mrf.mxu0
  %v1364 = vadd.f32 %v1338, %v1363
  %1365 = vdwg.mxu0
  %v1366 = vmax.f32 %v1364, 0.0
  %v1367 = vld [vmem:[%s12] sm:$0xff]
  %v1368 = vld [vmem:[%s12 + $0x8] sm:$0xff]
  %v1369 = vld [vmem:[%s12 + $0x10] sm:$0xff]
  %v1370 = vld [vmem:[#allocation3] sm:$0x1]
  %v1372 = vperm.slane %v1370, 0
  %vm1374 = vcmask 195584
  %v1376 = vsel %vm1374, %v1366, 0
  %1378 = vmatpush.msra.mxu0 0.0
  %1379 = vmatpush.msra.mxu0 0.0
  %1380 = vmatpush.msra.mxu0 0.0
  %1381 = vmatpush.msra.mxu0 0.0
  %1382 = vmatpush.msra.mxu0 0.0
  %1383 = vmatpush.msra.mxu0 0.0
  %1384 = vmatpush.msra.mxu0 0.0
  %1385 = vmatpush.msra.mxu0 0.0
  %1386 = vmatpush.msra.mxu0 0.0
  %1387 = vmatpush.msra.mxu0 0.0
  %1388 = vmatpush.msra.mxu0 0.0
  %1389 = vmatpush.msra.mxu0 0.0
  %1390 = vmatpush.msra.mxu0 0.0
  %1391 = vmatpush.msra.mxu0 %v1369
  %1392 = vmatpush.msra.mxu0 %v1368
  %1393 = vmatpush.msra.mxu0 %v1367
  %1394 = vmatmul.f32.gmra.mxu0 %v1376
  %v1395 = vpop.f32.mrf.mxu0
  %v1396 = vadd.f32 %v1372, %v1395
  %1397 = vdwg.mxu0
  %v1398 = vxor.u32 %v1396, 2147483648
  %v1399 = vmul.f32 %v1398, 1.442695
  %v1400 = vpow.pop %v1399
  %v1401 = vadd.f32 %v1400, 1.0
  %v1402 = vrcp.pop %v1401
  %v1403 = vmul.f32 %v1401, %v1402
  %v1404 = vsub.f32 1.0, %v1403
  %v1405 = vmul.f32 %v1402, %v1404
  %v1406 = vadd.f32 %v1402, %v1405
  %vm1407 = vweird.f32 %v1401
  %vm1408 = vweird.f32 %v1402
  %vm1409 = vmor %vm1407, %vm1408
  %v1410 = vsel %vm1409, %v1402, %v1406
  %v1411 = vand.u32 2147483647, %v1401
  %vm1412 = vcmp.eq.f32.partialorder %v1411, 8.507059e+37
  %v1413 = vand.u32 %v1401, 2147483648
  %v1414 = vor.u32 1.1754944e-38, %v1413
  %v1415 = vsel %vm1412, %v1414, %v1410
  %v1416 = vmul.f32 1.0, %v1415
  %vm1417 = vcmask 1024
  %1418 = vst.msk [vmem:[%s14] sm:$0x3] %vm1417, %v1416
  // Predicated region
  $region58: #{tpu_custom_call.1} parent=0 // pred_check
    _
  $region59: #{tpu_custom_call.1} parent=0 // pred_check_branch
    %1420 = sbr.rel (0) target = $region61
  $region60: #{tpu_custom_call.1} parent=0 // pred_region
    _
  $region61: #{tpu_custom_call.1} parent=0 // pred_fallthru
    _
  // Predicated region
  $region62: #{tpu_custom_call.1} parent=0 // pred_check
    _
  $region63: #{tpu_custom_call.1} parent=0 // pred_check_branch
    %1422 = sbr.rel (0) target = $region65
  $region64: #{tpu_custom_call.1} parent=0 // pred_region
    _
  $region65: #{tpu_custom_call.1} parent=0 // pred_fallthru
    _

</llo_original>
